<compile_context>
chip_gen: v5e
topology: v5e:2x2
jax: 0.10.0
libtpu: 0.0.40
codegen_flags: <defaults>
</compile_context>

<pallas_src>
import jax
import jax.numpy as jnp
from jax.experimental import pallas as pl
from jax.experimental.pallas import tpu as pltpu

_EPS = 1e-5
B = 8      # rows per head (the PyTorch batch)
F = 128    # input features (== conv length L; fixed by fc1/fc3 in_features)
C = 64     # hidden channels
K = 16     # cfg.k

# Row indices inside the packed small-parameter slab (16, 128).
_R_G0, _R_BE0 = 0, 1
_R_G1, _R_BE1 = 2, 3
_R_G2, _R_BE2 = 4, 5
_R_G3, _R_BE3 = 6, 7
_R_FB4 = 8
VEC_ROWS = 16

# Column indices inside the conv-branch column slab (C, 8).
_C_W1, _C_GC1, _C_BC1, _C_GC2, _C_BC2 = 0, 1, 2, 3, 4
COL_W = 8

# Row offsets inside the packed weight-matrix slab (448, 64).
_O_FW1, _O_W2, _O_FW2, _O_FW3A, _O_FW3B, _O_FW4 = 0, 128, 192, 256, 320, 384
MAT_ROWS = 448


def _bn_rows(u, g, b):
    """Training-mode BatchNorm over rows; one pass, variance clamped at 0."""
    inv_n = 1.0 / u.shape[0]
    s1 = jnp.sum(u, axis=0, keepdims=True)
    s2 = jnp.sum(u * u, axis=0, keepdims=True)
    mu = s1 * inv_n
    var = jnp.maximum(s2 * inv_n - mu * mu, 0.0)
    return (u - mu) * jax.lax.rsqrt(var + _EPS) * g + b


def net_kernel(x_ref, vec_ref, mat_ref, col_ref, out_ref):
    x = x_ref[0]                            # (B, F) f32 for this head
    vec = vec_ref[...]                      # (16, 128) packed small params
    col = col_ref[...]                      # (C, 8) conv-branch per-channel columns

    g0, be0 = vec[_R_G0:_R_G0 + 1, :], vec[_R_BE0:_R_BE0 + 1, :]    # (1, F)
    g1, be1 = vec[_R_G1:_R_G1 + 1, :C], vec[_R_BE1:_R_BE1 + 1, :C]
    g2, be2 = vec[_R_G2:_R_G2 + 1, :C], vec[_R_BE2:_R_BE2 + 1, :C]
    g3, be3 = vec[_R_G3:_R_G3 + 1, :C], vec[_R_BE3:_R_BE3 + 1, :C]
    fb4 = vec[_R_FB4:_R_FB4 + 1, :C]        # (1, C); zero beyond K

    w1c = col[:, _C_W1:_C_W1 + 1]           # (C, 1)
    gc1c = col[:, _C_GC1:_C_GC1 + 1]
    bc1c = col[:, _C_BC1:_C_BC1 + 1]
    gc2c = col[:, _C_GC2:_C_GC2 + 1]
    bc2c = col[:, _C_BC2:_C_BC2 + 1]

    fw1 = mat_ref[_O_FW1:_O_FW1 + F, :]     # (128, 64)
    w2dc = mat_ref[_O_W2:_O_W2 + C, :]      # (64, 64)  = conv2 weight (C_out, C_in)
    fw2 = mat_ref[_O_FW2:_O_FW2 + C, :]     # (64, 64)
    fw3a = mat_ref[_O_FW3A:_O_FW3A + C, :]  # (64, 64)
    fw3b = mat_ref[_O_FW3B:_O_FW3B + C, :]  # (64, 64)
    fw4 = mat_ref[_O_FW4:_O_FW4 + C, :]     # (64, 64); cols >= K are zero

    # ---------------- bn0 (stats over batch, per input feature) ----------------
    inv_b = 1.0 / B
    s1 = jnp.sum(x, axis=0, keepdims=True)
    s2 = jnp.sum(x * x, axis=0, keepdims=True)
    mu0 = s1 * inv_b
    var0 = jnp.maximum(s2 * inv_b - mu0 * mu0, 0.0)
    inv_std0 = jax.lax.rsqrt(var0 + _EPS)
    xh = (x - mu0) * inv_std0 * g0 + be0                            # (B, F)

    # ---------------- conv branch (lane-dense, channel on sublanes) -----------
    # conv1(1->64,k=1) + bn_conv1 collapsed to one broadcast multiply-add.
    # Global mean/var of xh derived analytically from bn0's per-column stats
    # (exact: per-column mean of xh is be0, per-column E[xh^2] is
    #  g0^2*var0/(var0+eps) + be0^2).  conv biases cancel under training BN.
    inv_f = 1.0 / F
    mx = jnp.sum(be0) * inv_f
    ex2 = jnp.sum(g0 * g0 * (var0 * inv_std0 * inv_std0) + be0 * be0) * inv_f
    vx = jnp.maximum(ex2 - mx * mx, 0.0)
    sc = w1c * gc1c * jax.lax.rsqrt(w1c * w1c * vx + _EPS)          # (C, 1)
    bb = bc1c - mx * sc                                             # (C, 1)

    xh3 = jax.lax.broadcast_in_dim(xh, (B, C, F), (0, 2))           # (B, C, F)
    y1 = jnp.maximum(xh3 * sc[None] + bb[None], 0.0)                # (B, C, F)

    # conv2 (bias cancels under bn_conv2): batched matmul, N=128 lane-dense RHS.
    # Kept in f32 for accuracy (MXU is nowhere near the bottleneck here).
    w2b = jnp.broadcast_to(w2dc[None], (B, C, C))                   # (B, C, C)
    u2 = jnp.einsum('bdc,bcf->bdf', w2b, y1,
                    preferred_element_type=jnp.float32)             # (B, C, F)

    inv_n2 = 1.0 / (B * F)
    t1 = jnp.sum(jnp.sum(u2, axis=2, keepdims=True), axis=0, keepdims=True)
    t2 = jnp.sum(jnp.sum(u2 * u2, axis=2, keepdims=True), axis=0, keepdims=True)
    mu2 = t1 * inv_n2                                               # (1, C, 1)
    var2 = jnp.maximum(t2 * inv_n2 - mu2 * mu2, 0.0)
    y2 = jnp.maximum((u2 - mu2) * jax.lax.rsqrt(var2 + _EPS) * gc2c[None]
                     + bc2c[None], 0.0)                             # (B, C, F)
    ymax = jnp.max(y2, axis=2)                                      # (B, C)

    # ---------------- fc branch (fc1/fc2/fc3 biases cancel under their BNs) ----
    h1 = jnp.maximum(_bn_rows(
        jnp.dot(xh, fw1, preferred_element_type=jnp.float32), g1, be1), 0.0)
    h2 = jnp.maximum(_bn_rows(
        jnp.dot(h1, fw2, preferred_element_type=jnp.float32), g2, be2), 0.0)
    # cat([h2, ymax], 1) @ W3^T == h2 @ fw3a + ymax @ fw3b  (W3 split host-side)
    u3 = (jnp.dot(h2, fw3a, preferred_element_type=jnp.float32)
          + jnp.dot(ymax, fw3b, preferred_element_type=jnp.float32))
    h3 = jnp.maximum(_bn_rows(u3, g3, be3), 0.0)                    # (B, C)

    o = jnp.dot(h3, fw4, preferred_element_type=jnp.float32)        # (B, 64)
    # Lane-dense padded store (cols >= K are zero); sliced to K host-side.
    out_ref[0] = o + fb4


def net_forward(x, vec_slab, mat_slab, col_slab):
    """x: (H, B, F) — H independent T-Net heads, each with its own BN stats."""
    H = x.shape[0]
    flops = H * (2 * B * C * C * F          # conv2
                 + 2 * B * F * C            # fc1
                 + 4 * 2 * B * C * C        # fc2, fc3a, fc3b, fc4
                 + 8 * B * C * F)           # y1 build / bn_conv2 / relu / max
    bytes_accessed = (x.size * 4 + H * B * C * 4
                      + (VEC_ROWS * 128 + MAT_ROWS * C + C * COL_W) * 4)
    out = pl.pallas_call(
        net_kernel,
        out_shape=jax.ShapeDtypeStruct((H, B, C), jnp.float32),
        grid=(H,),
        in_specs=[
            pl.BlockSpec((1, B, F), lambda h: (h, 0, 0)),        # per-head input
            pl.BlockSpec((VEC_ROWS, F), lambda h: (0, 0)),       # resident params
            pl.BlockSpec((MAT_ROWS, C), lambda h: (0, 0)),       # resident params
            pl.BlockSpec((C, COL_W), lambda h: (0, 0)),          # resident params
        ],
        out_specs=pl.BlockSpec((1, B, C), lambda h: (h, 0, 0)),
        compiler_params=pltpu.CompilerParams(
            dimension_semantics=("parallel",)),
        cost_estimate=pl.CostEstimate(
            flops=int(flops),
            transcendentals=int(H * (F + 5 * C)),
            bytes_accessed=int(bytes_accessed)),
    )(x, vec_slab, mat_slab, col_slab)
    return out[..., :K]


# ---------------- deterministic parameter construction ----------------
def make_params(key):
    ks = iter(jax.random.split(key, 40))

    def nrm(shape, s=0.1):
        return (s * jax.random.normal(next(ks), shape)).astype(jnp.float32)

    def bn_params(c):
        g = (1.0 + 0.1 * jax.random.normal(next(ks), (1, c))).astype(jnp.float32)
        b = (0.1 * jax.random.normal(next(ks), (1, c))).astype(jnp.float32)
        return g, b

    g0, be0 = bn_params(F)               # bn0
    w1 = nrm((1, C))                     # conv1 weight (64,1,1) -> row
    b1 = nrm((1, C))
    gc1, bc1 = bn_params(C)              # bn_conv1
    w2t = nrm((C, C))                    # conv2 weight (co,ci,1) -> (ci,co)
    b2 = nrm((1, C))
    gc2, bc2 = bn_params(C)              # bn_conv2
    fw1 = nrm((F, C))                    # fc1 weight.T
    fb1 = nrm((1, C))
    g1, be1 = bn_params(C)
    fw2 = nrm((C, C))                    # fc2 weight.T
    fb2 = nrm((1, C))
    g2, be2 = bn_params(C)
    fw3 = nrm((F, C))                    # fc3 weight.T, split into [x-part; y-part]
    fw3a, fw3b = fw3[:C], fw3[C:]
    fb3 = nrm((1, C))
    g3, be3 = bn_params(C)
    fw4 = nrm((C, K))                    # fc4 weight.T
    fb4 = nrm((1, K))
    return (g0, be0, w1, b1, gc1, bc1, w2t, b2, gc2, bc2,
            fw1, fb1, g1, be1, fw2, fb2, g2, be2,
            fw3a, fw3b, fb3, g3, be3, fw4, fb4)


def pack_params(params):
    """Pack params into three slabs: (16,128) rows, (448,64) matrices, (64,8) columns."""
    (g0, be0, w1, b1, gc1, bc1, w2t, b2, gc2, bc2,
     fw1, fb1, g1, be1, fw2, fb2, g2, be2,
     fw3a, fw3b, fb3, g3, be3, fw4, fb4) = params
    del b1, b2, fb1, fb2, fb3   # cancel exactly under training-mode BatchNorm

    def row(v):
        return jnp.pad(v, ((0, 0), (0, F - v.shape[1])))

    vec = jnp.concatenate(
        [row(v) for v in (g0, be0, g1, be1, g2, be2, g3, be3, fb4)]
        + [jnp.zeros((VEC_ROWS - 9, F), jnp.float32)], axis=0)        # (16, 128)
    col = jnp.concatenate(
        [w1.T, gc1.T, bc1.T, gc2.T, bc2.T,
         jnp.zeros((C, COL_W - 5), jnp.float32)], axis=1)             # (64, 8)
    mat = jnp.concatenate(
        [fw1, w2t.T, fw2, fw3a, fw3b,
         jnp.pad(fw4, ((0, 0), (0, C - K)))], axis=0)                 # (448, 64)
    return (vec.astype(jnp.float32), mat.astype(jnp.float32),
            col.astype(jnp.float32))


# ---------------- pure-JAX reference (same math, PyTorch semantics) ----------------
def ref_forward(x, params):
    (g0, be0, w1, b1, gc1, bc1, w2t, b2, gc2, bc2,
     fw1, fb1, g1, be1, fw2, fb2, g2, be2,
     fw3a, fw3b, fb3, g3, be3, fw4, fb4) = params

    def bn(u, g, b, axes):
        mu = u.mean(axes, keepdims=True)
        var = ((u - mu) ** 2).mean(axes, keepdims=True)
        return (u - mu) / jnp.sqrt(var + _EPS) * g + b

    xh = bn(x, g0, be0, (0,))
    u1 = xh[:, :, None] * w1.reshape(1, 1, C) + b1.reshape(1, 1, C)
    y1 = jax.nn.relu(bn(u1, gc1.reshape(1, 1, C), bc1.reshape(1, 1, C), (0, 1)))
    u2 = jnp.einsum('blc,cd->bld', y1, w2t) + b2.reshape(1, 1, C)
    y2 = jax.nn.relu(bn(u2, gc2.reshape(1, 1, C), bc2.reshape(1, 1, C), (0, 1)))
    ymax = y2.max(axis=1)
    h1 = jax.nn.relu(bn(xh @ fw1 + fb1, g1, be1, (0,)))
    h2 = jax.nn.relu(bn(h1 @ fw2 + fb2, g2, be2, (0,)))
    cat = jnp.concatenate([h2, ymax], axis=1)
    fw3 = jnp.concatenate([fw3a, fw3b], axis=0)
    h3 = jax.nn.relu(bn(cat @ fw3 + fb3, g3, be3, (0,)))
    return h3 @ fw4 + fb4


if __name__ == "__main__":
    key = jax.random.PRNGKey(0)
    kx, kp = jax.random.split(key)
    H = 4                                        # independent T-Net heads per call
    x = jax.random.normal(kx, (H, B, F), dtype=jnp.float32)
    params = make_params(kp)
    vec_slab, mat_slab, col_slab = pack_params(params)

    out = jax.jit(net_forward)(x, vec_slab, mat_slab, col_slab)
    out = jax.block_until_ready(out)

    ref = jax.vmap(lambda xb: ref_forward(xb, params))(x)
    assert out.shape == (H, B, K), out.shape
    assert bool(jnp.all(jnp.isfinite(out)))
    max_err = float(jnp.max(jnp.abs(out - ref)))
    assert bool(jnp.allclose(out, ref, rtol=1e-2, atol=1e-2)), max_err
    print("KERNEL_OK")
</pallas_src>

<mosaic_0001>
module attributes {stable_mosaic.version = 11 : i64} {
  func.func @net_kernel(%arg0: i32, %arg1: memref<1x8x128xf32, #tpu.memory_space<vmem>>, %arg2: memref<16x128xf32, #tpu.memory_space<vmem>>, %arg3: memref<448x64xf32, #tpu.memory_space<vmem>>, %arg4: memref<64x8xf32, #tpu.memory_space<vmem>>, %arg5: memref<1x8x64xf32, #tpu.memory_space<vmem>>) attributes {dimension_semantics = [#tpu.dimension_semantics<parallel>], iteration_bounds = array<i64: 4>, scalar_prefetch = 0 : i64, scratch_operands = 0 : i64, tpu.core_type = #tpu.core_type<tc>, window_params = [{transform_indices = @transform_0, window_bounds = array<i64: 1, 8, 128>}, {pipeline_mode = #tpu.pipeline_mode<synchronous>, transform_indices = @transform_1, window_bounds = array<i64: 16, 128>}, {pipeline_mode = #tpu.pipeline_mode<synchronous>, transform_indices = @transform_2, window_bounds = array<i64: 448, 64>}, {pipeline_mode = #tpu.pipeline_mode<synchronous>, transform_indices = @transform_3, window_bounds = array<i64: 64, 8>}, {transform_indices = @transform_4, window_bounds = array<i64: 1, 8, 64>}]} {
    %c0 = arith.constant 0 : index
    %c0_0 = arith.constant 0 : index
    %c0_1 = arith.constant 0 : index
    %0 = vector.load %arg1[%c0, %c0_0, %c0_1] : memref<1x8x128xf32, #tpu.memory_space<vmem>>, vector<1x8x128xf32>
    %1 = vector.shape_cast %0 : vector<1x8x128xf32> to vector<8x128xf32>
    %c0_2 = arith.constant 0 : index
    %c0_3 = arith.constant 0 : index
    %2 = vector.load %arg2[%c0_2, %c0_3] : memref<16x128xf32, #tpu.memory_space<vmem>>, vector<16x128xf32>
    %c0_4 = arith.constant 0 : index
    %c0_5 = arith.constant 0 : index
    %3 = vector.load %arg4[%c0_4, %c0_5] : memref<64x8xf32, #tpu.memory_space<vmem>>, vector<64x8xf32>
    %4 = vector.extract_strided_slice %2 {offsets = [0, 0], sizes = [1, 128], strides = [1, 1]} : vector<16x128xf32> to vector<1x128xf32>
    %5 = vector.extract_strided_slice %2 {offsets = [1, 0], sizes = [1, 128], strides = [1, 1]} : vector<16x128xf32> to vector<1x128xf32>
    %6 = vector.extract_strided_slice %2 {offsets = [2, 0], sizes = [1, 64], strides = [1, 1]} : vector<16x128xf32> to vector<1x64xf32>
    %7 = vector.extract_strided_slice %2 {offsets = [3, 0], sizes = [1, 64], strides = [1, 1]} : vector<16x128xf32> to vector<1x64xf32>
    %8 = vector.extract_strided_slice %2 {offsets = [4, 0], sizes = [1, 64], strides = [1, 1]} : vector<16x128xf32> to vector<1x64xf32>
    %9 = vector.extract_strided_slice %2 {offsets = [5, 0], sizes = [1, 64], strides = [1, 1]} : vector<16x128xf32> to vector<1x64xf32>
    %10 = vector.extract_strided_slice %2 {offsets = [6, 0], sizes = [1, 64], strides = [1, 1]} : vector<16x128xf32> to vector<1x64xf32>
    %11 = vector.extract_strided_slice %2 {offsets = [7, 0], sizes = [1, 64], strides = [1, 1]} : vector<16x128xf32> to vector<1x64xf32>
    %12 = vector.extract_strided_slice %2 {offsets = [8, 0], sizes = [1, 64], strides = [1, 1]} : vector<16x128xf32> to vector<1x64xf32>
    %13 = vector.extract_strided_slice %3 {offsets = [0, 0], sizes = [64, 1], strides = [1, 1]} : vector<64x8xf32> to vector<64x1xf32>
    %14 = vector.extract_strided_slice %3 {offsets = [0, 1], sizes = [64, 1], strides = [1, 1]} : vector<64x8xf32> to vector<64x1xf32>
    %15 = vector.extract_strided_slice %3 {offsets = [0, 2], sizes = [64, 1], strides = [1, 1]} : vector<64x8xf32> to vector<64x1xf32>
    %16 = vector.extract_strided_slice %3 {offsets = [0, 3], sizes = [64, 1], strides = [1, 1]} : vector<64x8xf32> to vector<64x1xf32>
    %17 = vector.extract_strided_slice %3 {offsets = [0, 4], sizes = [64, 1], strides = [1, 1]} : vector<64x8xf32> to vector<64x1xf32>
    %c0_6 = arith.constant 0 : index
    %c0_7 = arith.constant 0 : index
    %18 = vector.load %arg3[%c0_6, %c0_7] : memref<448x64xf32, #tpu.memory_space<vmem>>, vector<128x64xf32>
    %c128 = arith.constant 128 : index
    %c0_8 = arith.constant 0 : index
    %19 = vector.load %arg3[%c128, %c0_8] : memref<448x64xf32, #tpu.memory_space<vmem>>, vector<64x64xf32>
    %c192 = arith.constant 192 : index
    %c0_9 = arith.constant 0 : index
    %20 = vector.load %arg3[%c192, %c0_9] : memref<448x64xf32, #tpu.memory_space<vmem>>, vector<64x64xf32>
    %c256 = arith.constant 256 : index
    %c0_10 = arith.constant 0 : index
    %21 = vector.load %arg3[%c256, %c0_10] : memref<448x64xf32, #tpu.memory_space<vmem>>, vector<64x64xf32>
    %c320 = arith.constant 320 : index
    %c0_11 = arith.constant 0 : index
    %22 = vector.load %arg3[%c320, %c0_11] : memref<448x64xf32, #tpu.memory_space<vmem>>, vector<64x64xf32>
    %c384 = arith.constant 384 : index
    %c0_12 = arith.constant 0 : index
    %23 = vector.load %arg3[%c384, %c0_12] : memref<448x64xf32, #tpu.memory_space<vmem>>, vector<64x64xf32>
    %cst = arith.constant dense<0.000000e+00> : vector<128xf32>
    %24 = vector.multi_reduction <add>, %1, %cst [0] : vector<8x128xf32> to vector<128xf32>
    %25 = vector.shape_cast %24 : vector<128xf32> to vector<1x128xf32>
    %26 = arith.mulf %1, %1 : vector<8x128xf32>
    %cst_13 = arith.constant dense<0.000000e+00> : vector<128xf32>
    %27 = vector.multi_reduction <add>, %26, %cst_13 [0] : vector<8x128xf32> to vector<128xf32>
    %28 = vector.shape_cast %27 : vector<128xf32> to vector<1x128xf32>
    %cst_14 = arith.constant 1.250000e-01 : f32
    %29 = vector.broadcast %cst_14 : f32 to vector<1x128xf32>
    %30 = arith.mulf %25, %29 : vector<1x128xf32>
    %cst_15 = arith.constant 1.250000e-01 : f32
    %31 = vector.broadcast %cst_15 : f32 to vector<1x128xf32>
    %32 = arith.mulf %28, %31 : vector<1x128xf32>
    %33 = arith.mulf %30, %30 : vector<1x128xf32>
    %34 = arith.subf %32, %33 : vector<1x128xf32>
    %cst_16 = arith.constant 0.000000e+00 : f32
    %35 = vector.broadcast %cst_16 : f32 to vector<1x128xf32>
    %36 = arith.maximumf %34, %35 : vector<1x128xf32>
    %cst_17 = arith.constant 9.99999974E-6 : f32
    %37 = vector.broadcast %cst_17 : f32 to vector<1x128xf32>
    %38 = arith.addf %36, %37 : vector<1x128xf32>
    %39 = math.rsqrt %38 : vector<1x128xf32>
    %40 = vector.broadcast %30 : vector<1x128xf32> to vector<8x128xf32>
    %41 = arith.subf %1, %40 : vector<8x128xf32>
    %42 = vector.broadcast %39 : vector<1x128xf32> to vector<8x128xf32>
    %43 = arith.mulf %41, %42 : vector<8x128xf32>
    %44 = vector.broadcast %4 : vector<1x128xf32> to vector<8x128xf32>
    %45 = arith.mulf %43, %44 : vector<8x128xf32>
    %46 = vector.broadcast %5 : vector<1x128xf32> to vector<8x128xf32>
    %47 = arith.addf %45, %46 : vector<8x128xf32>
    %48 = vector.shape_cast %5 : vector<1x128xf32> to vector<1x1x128xf32>
    %cst_18 = arith.constant dense<0.000000e+00> : vector<1xf32>
    %49 = vector.multi_reduction <add>, %48, %cst_18 [1, 2] : vector<1x1x128xf32> to vector<1xf32>
    %50 = vector.shape_cast %49 : vector<1xf32> to vector<1x1x1xf32>
    %51 = vector.extract %50[0, 0, 0] : f32 from vector<1x1x1xf32>
    %cst_19 = arith.constant 7.812500e-03 : f32
    %52 = arith.mulf %51, %cst_19 : f32
    %53 = arith.mulf %4, %4 : vector<1x128xf32>
    %54 = arith.mulf %36, %39 : vector<1x128xf32>
    %55 = arith.mulf %54, %39 : vector<1x128xf32>
    %56 = arith.mulf %53, %55 : vector<1x128xf32>
    %57 = arith.mulf %5, %5 : vector<1x128xf32>
    %58 = arith.addf %56, %57 : vector<1x128xf32>
    %59 = vector.shape_cast %58 : vector<1x128xf32> to vector<1x1x128xf32>
    %cst_20 = arith.constant dense<0.000000e+00> : vector<1xf32>
    %60 = vector.multi_reduction <add>, %59, %cst_20 [1, 2] : vector<1x1x128xf32> to vector<1xf32>
    %61 = vector.shape_cast %60 : vector<1xf32> to vector<1x1x1xf32>
    %62 = vector.extract %61[0, 0, 0] : f32 from vector<1x1x1xf32>
    %cst_21 = arith.constant 7.812500e-03 : f32
    %63 = arith.mulf %62, %cst_21 : f32
    %64 = arith.mulf %52, %52 : f32
    %65 = arith.subf %63, %64 : f32
    %cst_22 = arith.constant 0.000000e+00 : f32
    %66 = arith.maximumf %65, %cst_22 : f32
    %67 = arith.mulf %13, %14 : vector<64x1xf32>
    %68 = arith.mulf %13, %13 : vector<64x1xf32>
    %69 = vector.broadcast %66 : f32 to vector<64x1xf32>
    %70 = arith.mulf %68, %69 : vector<64x1xf32>
    %cst_23 = arith.constant 9.99999974E-6 : f32
    %71 = vector.broadcast %cst_23 : f32 to vector<64x1xf32>
    %72 = arith.addf %70, %71 : vector<64x1xf32>
    %73 = math.rsqrt %72 : vector<64x1xf32>
    %74 = arith.mulf %67, %73 : vector<64x1xf32>
    %75 = vector.broadcast %52 : f32 to vector<64x1xf32>
    %76 = arith.mulf %75, %74 : vector<64x1xf32>
    %77 = arith.subf %15, %76 : vector<64x1xf32>
    %78 = vector.shape_cast %47 : vector<8x128xf32> to vector<8x1x128xf32>
    %79 = vector.broadcast %78 : vector<8x1x128xf32> to vector<8x64x128xf32>
    %80 = vector.shape_cast %74 : vector<64x1xf32> to vector<1x64x1xf32>
    %81 = vector.broadcast %80 : vector<1x64x1xf32> to vector<8x64x128xf32>
    %82 = arith.mulf %79, %81 : vector<8x64x128xf32>
    %83 = vector.shape_cast %77 : vector<64x1xf32> to vector<1x64x1xf32>
    %84 = vector.broadcast %83 : vector<1x64x1xf32> to vector<8x64x128xf32>
    %85 = arith.addf %82, %84 : vector<8x64x128xf32>
    %cst_24 = arith.constant 0.000000e+00 : f32
    %86 = vector.broadcast %cst_24 : f32 to vector<8x64x128xf32>
    %87 = arith.maximumf %85, %86 : vector<8x64x128xf32>
    %88 = vector.shape_cast %19 : vector<64x64xf32> to vector<1x64x64xf32>
    %89 = vector.shape_cast %88 : vector<1x64x64xf32> to vector<1x64x64xf32>
    %90 = vector.broadcast %89 : vector<1x64x64xf32> to vector<8x64x64xf32>
    "tpu.trace_start"() <{level = 10 : i32, message = "bdc,bcf->bdf"}> : () -> ()
    %cst_25 = arith.constant dense<0.000000e+00> : vector<8x64x128xf32>
    %91 = tpu.matmul %90, %87, %cst_25 {dimension_numbers = #tpu.dot_dimension_numbers<[2], [1], [1], [2], [0, 0, 0, 1, 1, 2], [0], [0]>} : vector<8x64x64xf32>, vector<8x64x128xf32>, vector<8x64x128xf32> -> vector<8x64x128xf32>
    "tpu.trace_stop"() : () -> ()
    %cst_26 = arith.constant dense<0.000000e+00> : vector<8x64xf32>
    %92 = vector.multi_reduction <add>, %91, %cst_26 [2] : vector<8x64x128xf32> to vector<8x64xf32>
    %93 = vector.shape_cast %92 : vector<8x64xf32> to vector<8x64x1xf32>
    %cst_27 = arith.constant dense<0.000000e+00> : vector<64x1xf32>
    %94 = vector.multi_reduction <add>, %93, %cst_27 [0] : vector<8x64x1xf32> to vector<64x1xf32>
    %95 = vector.shape_cast %94 : vector<64x1xf32> to vector<1x64x1xf32>
    %96 = arith.mulf %91, %91 : vector<8x64x128xf32>
    %cst_28 = arith.constant dense<0.000000e+00> : vector<8x64xf32>
    %97 = vector.multi_reduction <add>, %96, %cst_28 [2] : vector<8x64x128xf32> to vector<8x64xf32>
    %98 = vector.shape_cast %97 : vector<8x64xf32> to vector<8x64x1xf32>
    %cst_29 = arith.constant dense<0.000000e+00> : vector<64x1xf32>
    %99 = vector.multi_reduction <add>, %98, %cst_29 [0] : vector<8x64x1xf32> to vector<64x1xf32>
    %100 = vector.shape_cast %99 : vector<64x1xf32> to vector<1x64x1xf32>
    %cst_30 = arith.constant 9.765625E-4 : f32
    %101 = vector.broadcast %cst_30 : f32 to vector<1x64x1xf32>
    %102 = arith.mulf %95, %101 : vector<1x64x1xf32>
    %cst_31 = arith.constant 9.765625E-4 : f32
    %103 = vector.broadcast %cst_31 : f32 to vector<1x64x1xf32>
    %104 = arith.mulf %100, %103 : vector<1x64x1xf32>
    %105 = arith.mulf %102, %102 : vector<1x64x1xf32>
    %106 = arith.subf %104, %105 : vector<1x64x1xf32>
    %cst_32 = arith.constant 0.000000e+00 : f32
    %107 = vector.broadcast %cst_32 : f32 to vector<1x64x1xf32>
    %108 = arith.maximumf %106, %107 : vector<1x64x1xf32>
    %109 = vector.broadcast %102 : vector<1x64x1xf32> to vector<8x64x128xf32>
    %110 = arith.subf %91, %109 : vector<8x64x128xf32>
    %cst_33 = arith.constant 9.99999974E-6 : f32
    %111 = vector.broadcast %cst_33 : f32 to vector<1x64x1xf32>
    %112 = arith.addf %108, %111 : vector<1x64x1xf32>
    %113 = math.rsqrt %112 : vector<1x64x1xf32>
    %114 = vector.broadcast %113 : vector<1x64x1xf32> to vector<8x64x128xf32>
    %115 = arith.mulf %110, %114 : vector<8x64x128xf32>
    %116 = vector.shape_cast %16 : vector<64x1xf32> to vector<1x64x1xf32>
    %117 = vector.broadcast %116 : vector<1x64x1xf32> to vector<8x64x128xf32>
    %118 = arith.mulf %115, %117 : vector<8x64x128xf32>
    %119 = vector.shape_cast %17 : vector<64x1xf32> to vector<1x64x1xf32>
    %120 = vector.broadcast %119 : vector<1x64x1xf32> to vector<8x64x128xf32>
    %121 = arith.addf %118, %120 : vector<8x64x128xf32>
    %cst_34 = arith.constant 0.000000e+00 : f32
    %122 = vector.broadcast %cst_34 : f32 to vector<8x64x128xf32>
    %123 = arith.maximumf %121, %122 : vector<8x64x128xf32>
    %cst_35 = arith.constant dense<0xFF800000> : vector<8x64xf32>
    %124 = vector.multi_reduction <maximumf>, %123, %cst_35 [2] : vector<8x64x128xf32> to vector<8x64xf32>
    %cst_36 = arith.constant dense<0.000000e+00> : vector<8x64xf32>
    %125 = tpu.matmul %47, %18, %cst_36 {dimension_numbers = #tpu.dot_dimension_numbers<[1], [0], [0], [1], [0, 0, 1, 1], [], []>} : vector<8x128xf32>, vector<128x64xf32>, vector<8x64xf32> -> vector<8x64xf32>
    %cst_37 = arith.constant dense<0.000000e+00> : vector<64xf32>
    %126 = vector.multi_reduction <add>, %125, %cst_37 [0] : vector<8x64xf32> to vector<64xf32>
    %127 = vector.shape_cast %126 : vector<64xf32> to vector<1x64xf32>
    %128 = arith.mulf %125, %125 : vector<8x64xf32>
    %cst_38 = arith.constant dense<0.000000e+00> : vector<64xf32>
    %129 = vector.multi_reduction <add>, %128, %cst_38 [0] : vector<8x64xf32> to vector<64xf32>
    %130 = vector.shape_cast %129 : vector<64xf32> to vector<1x64xf32>
    %cst_39 = arith.constant 1.250000e-01 : f32
    %131 = vector.broadcast %cst_39 : f32 to vector<1x64xf32>
    %132 = arith.mulf %127, %131 : vector<1x64xf32>
    %cst_40 = arith.constant 1.250000e-01 : f32
    %133 = vector.broadcast %cst_40 : f32 to vector<1x64xf32>
    %134 = arith.mulf %130, %133 : vector<1x64xf32>
    %135 = arith.mulf %132, %132 : vector<1x64xf32>
    %136 = arith.subf %134, %135 : vector<1x64xf32>
    %cst_41 = arith.constant 0.000000e+00 : f32
    %137 = vector.broadcast %cst_41 : f32 to vector<1x64xf32>
    %138 = arith.maximumf %136, %137 : vector<1x64xf32>
    %139 = vector.broadcast %132 : vector<1x64xf32> to vector<8x64xf32>
    %140 = arith.subf %125, %139 : vector<8x64xf32>
    %cst_42 = arith.constant 9.99999974E-6 : f32
    %141 = vector.broadcast %cst_42 : f32 to vector<1x64xf32>
    %142 = arith.addf %138, %141 : vector<1x64xf32>
    %143 = math.rsqrt %142 : vector<1x64xf32>
    %144 = vector.broadcast %143 : vector<1x64xf32> to vector<8x64xf32>
    %145 = arith.mulf %140, %144 : vector<8x64xf32>
    %146 = vector.broadcast %6 : vector<1x64xf32> to vector<8x64xf32>
    %147 = arith.mulf %145, %146 : vector<8x64xf32>
    %148 = vector.broadcast %7 : vector<1x64xf32> to vector<8x64xf32>
    %149 = arith.addf %147, %148 : vector<8x64xf32>
    %cst_43 = arith.constant 0.000000e+00 : f32
    %150 = vector.broadcast %cst_43 : f32 to vector<8x64xf32>
    %151 = arith.maximumf %149, %150 : vector<8x64xf32>
    %cst_44 = arith.constant dense<0.000000e+00> : vector<8x64xf32>
    %152 = tpu.matmul %151, %20, %cst_44 {dimension_numbers = #tpu.dot_dimension_numbers<[1], [0], [0], [1], [0, 0, 1, 1], [], []>} : vector<8x64xf32>, vector<64x64xf32>, vector<8x64xf32> -> vector<8x64xf32>
    %cst_45 = arith.constant dense<0.000000e+00> : vector<64xf32>
    %153 = vector.multi_reduction <add>, %152, %cst_45 [0] : vector<8x64xf32> to vector<64xf32>
    %154 = vector.shape_cast %153 : vector<64xf32> to vector<1x64xf32>
    %155 = arith.mulf %152, %152 : vector<8x64xf32>
    %cst_46 = arith.constant dense<0.000000e+00> : vector<64xf32>
    %156 = vector.multi_reduction <add>, %155, %cst_46 [0] : vector<8x64xf32> to vector<64xf32>
    %157 = vector.shape_cast %156 : vector<64xf32> to vector<1x64xf32>
    %cst_47 = arith.constant 1.250000e-01 : f32
    %158 = vector.broadcast %cst_47 : f32 to vector<1x64xf32>
    %159 = arith.mulf %154, %158 : vector<1x64xf32>
    %cst_48 = arith.constant 1.250000e-01 : f32
    %160 = vector.broadcast %cst_48 : f32 to vector<1x64xf32>
    %161 = arith.mulf %157, %160 : vector<1x64xf32>
    %162 = arith.mulf %159, %159 : vector<1x64xf32>
    %163 = arith.subf %161, %162 : vector<1x64xf32>
    %cst_49 = arith.constant 0.000000e+00 : f32
    %164 = vector.broadcast %cst_49 : f32 to vector<1x64xf32>
    %165 = arith.maximumf %163, %164 : vector<1x64xf32>
    %166 = vector.broadcast %159 : vector<1x64xf32> to vector<8x64xf32>
    %167 = arith.subf %152, %166 : vector<8x64xf32>
    %cst_50 = arith.constant 9.99999974E-6 : f32
    %168 = vector.broadcast %cst_50 : f32 to vector<1x64xf32>
    %169 = arith.addf %165, %168 : vector<1x64xf32>
    %170 = math.rsqrt %169 : vector<1x64xf32>
    %171 = vector.broadcast %170 : vector<1x64xf32> to vector<8x64xf32>
    %172 = arith.mulf %167, %171 : vector<8x64xf32>
    %173 = vector.broadcast %8 : vector<1x64xf32> to vector<8x64xf32>
    %174 = arith.mulf %172, %173 : vector<8x64xf32>
    %175 = vector.broadcast %9 : vector<1x64xf32> to vector<8x64xf32>
    %176 = arith.addf %174, %175 : vector<8x64xf32>
    %cst_51 = arith.constant 0.000000e+00 : f32
    %177 = vector.broadcast %cst_51 : f32 to vector<8x64xf32>
    %178 = arith.maximumf %176, %177 : vector<8x64xf32>
    %cst_52 = arith.constant dense<0.000000e+00> : vector<8x64xf32>
    %179 = tpu.matmul %178, %21, %cst_52 {dimension_numbers = #tpu.dot_dimension_numbers<[1], [0], [0], [1], [0, 0, 1, 1], [], []>} : vector<8x64xf32>, vector<64x64xf32>, vector<8x64xf32> -> vector<8x64xf32>
    %cst_53 = arith.constant dense<0.000000e+00> : vector<8x64xf32>
    %180 = tpu.matmul %124, %22, %cst_53 {dimension_numbers = #tpu.dot_dimension_numbers<[1], [0], [0], [1], [0, 0, 1, 1], [], []>} : vector<8x64xf32>, vector<64x64xf32>, vector<8x64xf32> -> vector<8x64xf32>
    %181 = arith.addf %179, %180 : vector<8x64xf32>
    %cst_54 = arith.constant dense<0.000000e+00> : vector<64xf32>
    %182 = vector.multi_reduction <add>, %181, %cst_54 [0] : vector<8x64xf32> to vector<64xf32>
    %183 = vector.shape_cast %182 : vector<64xf32> to vector<1x64xf32>
    %184 = arith.mulf %181, %181 : vector<8x64xf32>
    %cst_55 = arith.constant dense<0.000000e+00> : vector<64xf32>
    %185 = vector.multi_reduction <add>, %184, %cst_55 [0] : vector<8x64xf32> to vector<64xf32>
    %186 = vector.shape_cast %185 : vector<64xf32> to vector<1x64xf32>
    %cst_56 = arith.constant 1.250000e-01 : f32
    %187 = vector.broadcast %cst_56 : f32 to vector<1x64xf32>
    %188 = arith.mulf %183, %187 : vector<1x64xf32>
    %cst_57 = arith.constant 1.250000e-01 : f32
    %189 = vector.broadcast %cst_57 : f32 to vector<1x64xf32>
    %190 = arith.mulf %186, %189 : vector<1x64xf32>
    %191 = arith.mulf %188, %188 : vector<1x64xf32>
    %192 = arith.subf %190, %191 : vector<1x64xf32>
    %cst_58 = arith.constant 0.000000e+00 : f32
    %193 = vector.broadcast %cst_58 : f32 to vector<1x64xf32>
    %194 = arith.maximumf %192, %193 : vector<1x64xf32>
    %195 = vector.broadcast %188 : vector<1x64xf32> to vector<8x64xf32>
    %196 = arith.subf %181, %195 : vector<8x64xf32>
    %cst_59 = arith.constant 9.99999974E-6 : f32
    %197 = vector.broadcast %cst_59 : f32 to vector<1x64xf32>
    %198 = arith.addf %194, %197 : vector<1x64xf32>
    %199 = math.rsqrt %198 : vector<1x64xf32>
    %200 = vector.broadcast %199 : vector<1x64xf32> to vector<8x64xf32>
    %201 = arith.mulf %196, %200 : vector<8x64xf32>
    %202 = vector.broadcast %10 : vector<1x64xf32> to vector<8x64xf32>
    %203 = arith.mulf %201, %202 : vector<8x64xf32>
    %204 = vector.broadcast %11 : vector<1x64xf32> to vector<8x64xf32>
    %205 = arith.addf %203, %204 : vector<8x64xf32>
    %cst_60 = arith.constant 0.000000e+00 : f32
    %206 = vector.broadcast %cst_60 : f32 to vector<8x64xf32>
    %207 = arith.maximumf %205, %206 : vector<8x64xf32>
    %cst_61 = arith.constant dense<0.000000e+00> : vector<8x64xf32>
    %208 = tpu.matmul %207, %23, %cst_61 {dimension_numbers = #tpu.dot_dimension_numbers<[1], [0], [0], [1], [0, 0, 1, 1], [], []>} : vector<8x64xf32>, vector<64x64xf32>, vector<8x64xf32> -> vector<8x64xf32>
    %209 = vector.broadcast %12 : vector<1x64xf32> to vector<8x64xf32>
    %210 = arith.addf %208, %209 : vector<8x64xf32>
    %c0_62 = arith.constant 0 : index
    %c0_63 = arith.constant 0 : index
    %c0_64 = arith.constant 0 : index
    %211 = vector.load %arg5[%c0_62, %c0_63, %c0_64] : memref<1x8x64xf32, #tpu.memory_space<vmem>>, vector<1x8x64xf32>
    %212 = vector.shape_cast %211 : vector<1x8x64xf32> to vector<8x64xf32>
    %213 = vector.shape_cast %210 : vector<8x64xf32> to vector<1x8x64xf32>
    tpu.vector_store %arg5[%c0_62, %c0_63, %c0_64], %213 {strides = array<i32>} : memref<1x8x64xf32, #tpu.memory_space<vmem>>, vector<1x8x64xf32>,
    return
  }
  func.func @transform_0(%arg0: i32) -> (i32, i32, i32) {
    %c0_i32 = arith.constant 0 : i32
    %c0_i32_0 = arith.constant 0 : i32
    %c0_i32_1 = arith.constant 0 : i32
    return %arg0, %c0_i32, %c0_i32_0 : i32, i32, i32
  }
  func.func @transform_1(%arg0: i32) -> (i32, i32) {
    %c0_i32 = arith.constant 0 : i32
    %c0_i32_0 = arith.constant 0 : i32
    %c0_i32_1 = arith.constant 0 : i32
    return %c0_i32, %c0_i32_0 : i32, i32
  }
  func.func @transform_2(%arg0: i32) -> (i32, i32) {
    %c0_i32 = arith.constant 0 : i32
    %c0_i32_0 = arith.constant 0 : i32
    %c0_i32_1 = arith.constant 0 : i32
    return %c0_i32, %c0_i32_0 : i32, i32
  }
  func.func @transform_3(%arg0: i32) -> (i32, i32) {
    %c0_i32 = arith.constant 0 : i32
    %c0_i32_0 = arith.constant 0 : i32
    %c0_i32_1 = arith.constant 0 : i32
    return %c0_i32, %c0_i32_0 : i32, i32
  }
  func.func @transform_4(%arg0: i32) -> (i32, i32, i32) {
    %c0_i32 = arith.constant 0 : i32
    %c0_i32_0 = arith.constant 0 : i32
    %c0_i32_1 = arith.constant 0 : i32
    return %arg0, %c0_i32, %c0_i32_0 : i32, i32, i32
  }
}

</mosaic_0001>

<llo_original>
// kernel: net_forward.1
$region0: #{net_forward.1}
  #allocation0 [shape = 'u32[]', space=smem, size = 0x4, offset = 0x4, fixed_abs, tag = 'smem constant byte address 0x4 - core index']
  #allocation1 [shape = 'u32[72,128]{1,0:T(1,128)}', space=vmem, size = 0x9000, scoped, tag = 'internal scratch']
  %s0 = inlined_call_operand.vmem [shape: f32[4,8,128], index: 0, kind: input, shape index: {}]
  %s1 = inlined_call_operand.vmem [shape: f32[16,128], index: 1, kind: input, shape index: {}]
  %s2 = inlined_call_operand.vmem [shape: f32[448,64], index: 2, kind: input, shape index: {}]
  %s3 = inlined_call_operand.vmem [shape: f32[64,8], index: 3, kind: input, shape index: {}]
  %s4 = inlined_call_operand.hbm [shape: f32[4,8,64], index: 4, kind: output, shape index: {}]
  %s5 = sld [smem:[#allocation0]]
  $region49: #{net_forward.1} parent=0
    _
  %s7 = ssub.s32 1, %s5
  %s8 = scalar_select 0, %s7, %s5
  $region1: #{net_forward.1} parent=0
    #allocation2 [shape = 'u8[8192]{0}', space=vmem, size = 0x2000, scoped, tag = 'output window, operand 0']
    #allocation3 [shape = 's32[2]{0}', space=sflag, size = 0x8, scoped, tag = 'scoped memory for net_forward.1']
    %9 = vsyncpa [#allocation3], 0
    %s10 = scalar_lea.sflag [#allocation3], 1
    %11 = vsyncpa %s10, 0
    loop: start=0, step=1, limit=6
    $region2: #{net_forward.1} parent=1 // loop_pre_header
      _
    $region3: #{net_forward.1} parent=1 // loop_header
      %s13 = sphi 0, %s17
      %p14 = scmp.ge.s32.totalorder %s13, 6
      %s23 = sphi 0, %s25
      %s26 = sphi 0, %s23
      %s27 = sphi 0, %s26
      %s43 = sphi 0, %s27
      %s47 = sphi 0, %s47
      %s49 = sphi 0, %s47
      %s50 = sphi 0, %s49
      %s64 = sphi 0, %s50
      %s68 = sphi 0, %s68
      %s70 = sphi 0, %s68
      %s71 = sphi 0, %s70
      %s85 = sphi 0, %s71
      %s89 = sphi 0, %s89
      %s91 = sphi 0, %s89
      %s92 = sphi 0, %s91
      %s106 = sphi 0, %s92
      %s112 = sphi 0, %s114
      %s115 = sphi 0, %s112
      %s116 = sphi 0, %s115
      %s132 = sphi 0, %s116
    $region4: #{net_forward.1} parent=1 // loop_header_branch
      %16 = sbr.rel (%p14) target = $region8
    $region5: #{net_forward.1} parent=1 // loop_body
      %s18 = ssub.s32 %s13, 1
      %s19 = ssub.s32 %s13, 2
      %s20 = sadd.s32 %s13, 1
      %s21 = ssub.s32 %s13, %s20
      %p22 = scmp.eq.s32.totalorder %s21, 0
      %s24 = sadd.s32 %s23, 1
      %s25 = scalar_select %p22, %s23, %s24
      %p28 = pneg %p22
      %p29 = scmp.eq.s32.totalorder %s13, 3
      %p30 = por %p28, %p29
      %p31 = scmp.ne.s32.totalorder %s23, %s26
      %p32 = scmp.eq.s32.totalorder %s13, 0
      %p33 = por %p31, %p32
      %p34 = scmp.ne.s32.totalorder %s23, %s26
      %p35 = scmp.eq.s32.totalorder %s18, 3
      %p36 = por %p34, %p35
      %p37 = scmp.ne.s32.totalorder %s26, %s27
      %p38 = scmp.eq.s32.totalorder %s18, 0
      %p39 = por %p37, %p38
      %p40 = scmp.ne.s32.totalorder %s26, %s27
      %p41 = scmp.eq.s32.totalorder %s19, 3
      %p42 = por %p40, %p41
      %p44 = scmp.ne.s32.totalorder %s27, %s43
      %p45 = scmp.eq.s32.totalorder %s19, 0
      %p46 = por %p44, %p45
      %s48 = sadd.s32 %s47, 1
      %p51 = scmp.eq.s32.totalorder %s13, 3
      %p52 = scmp.ne.s32.totalorder %s47, %s49
      %p53 = scmp.eq.s32.totalorder %s13, 0
      %p54 = por %p52, %p53
      %p55 = scmp.ne.s32.totalorder %s47, %s49
      %p56 = scmp.eq.s32.totalorder %s18, 3
      %p57 = por %p55, %p56
      %p58 = scmp.ne.s32.totalorder %s49, %s50
      %p59 = scmp.eq.s32.totalorder %s18, 0
      %p60 = por %p58, %p59
      %p61 = scmp.ne.s32.totalorder %s49, %s50
      %p62 = scmp.eq.s32.totalorder %s19, 3
      %p63 = por %p61, %p62
      %p65 = scmp.ne.s32.totalorder %s50, %s64
      %p66 = scmp.eq.s32.totalorder %s19, 0
      %p67 = por %p65, %p66
      %s69 = sadd.s32 %s68, 1
      %p72 = scmp.eq.s32.totalorder %s13, 3
      %p73 = scmp.ne.s32.totalorder %s68, %s70
      %p74 = scmp.eq.s32.totalorder %s13, 0
      %p75 = por %p73, %p74
      %p76 = scmp.ne.s32.totalorder %s68, %s70
      %p77 = scmp.eq.s32.totalorder %s18, 3
      %p78 = por %p76, %p77
      %p79 = scmp.ne.s32.totalorder %s70, %s71
      %p80 = scmp.eq.s32.totalorder %s18, 0
      %p81 = por %p79, %p80
      %p82 = scmp.ne.s32.totalorder %s70, %s71
      %p83 = scmp.eq.s32.totalorder %s19, 3
      %p84 = por %p82, %p83
      %p86 = scmp.ne.s32.totalorder %s71, %s85
      %p87 = scmp.eq.s32.totalorder %s19, 0
      %p88 = por %p86, %p87
      %s90 = sadd.s32 %s89, 1
      %p93 = scmp.eq.s32.totalorder %s13, 3
      %p94 = scmp.ne.s32.totalorder %s89, %s91
      %p95 = scmp.eq.s32.totalorder %s13, 0
      %p96 = por %p94, %p95
      %p97 = scmp.ne.s32.totalorder %s89, %s91
      %p98 = scmp.eq.s32.totalorder %s18, 3
      %p99 = por %p97, %p98
      %p100 = scmp.ne.s32.totalorder %s91, %s92
      %p101 = scmp.eq.s32.totalorder %s18, 0
      %p102 = por %p100, %p101
      %p103 = scmp.ne.s32.totalorder %s91, %s92
      %p104 = scmp.eq.s32.totalorder %s19, 3
      %p105 = por %p103, %p104
      %p107 = scmp.ne.s32.totalorder %s92, %s106
      %p108 = scmp.eq.s32.totalorder %s19, 0
      %p109 = por %p107, %p108
      %s110 = ssub.s32 %s13, %s20
      %p111 = scmp.eq.s32.totalorder %s110, 0
      %s113 = sadd.s32 %s112, 1
      %s114 = scalar_select %p111, %s112, %s113
      %p117 = pneg %p111
      %p118 = scmp.eq.s32.totalorder %s13, 3
      %p119 = por %p117, %p118
      %p120 = scmp.ne.s32.totalorder %s112, %s115
      %p121 = scmp.eq.s32.totalorder %s13, 0
      %p122 = por %p120, %p121
      %p123 = scmp.ne.s32.totalorder %s112, %s115
      %p124 = scmp.eq.s32.totalorder %s18, 3
      %p125 = por %p123, %p124
      %p126 = scmp.ne.s32.totalorder %s115, %s116
      %p127 = scmp.eq.s32.totalorder %s18, 0
      %p128 = por %p126, %p127
      %p129 = scmp.ne.s32.totalorder %s115, %s116
      %p130 = scmp.eq.s32.totalorder %s19, 3
      %p131 = por %p129, %p130
      %p133 = scmp.ne.s32.totalorder %s116, %s132
      %p134 = scmp.eq.s32.totalorder %s19, 0
      %p135 = por %p133, %p134
      %p136 = scmp.le.s32.totalorder 1, %s13
      %p137 = scmp.lt.s32.totalorder %s13, 5
      %p138 = pnand %p136, %p137
      %p139 = pneg %p138
      // Predicated region
      $region9: #{net_forward.1} parent=5 // pred_check
        _
      $region10: #{net_forward.1} parent=5 // pred_check_branch
        %141 = sbr.rel (%p138) target = $region12
      $region11: #{net_forward.1} parent=5 // pred_region
        %s142 = ssub.s32 %s13, 1
        // Predicated region
        $region13: #{net_forward.1} parent=11 // pred_check
          %p143 = pneg %p60
        $region14: #{net_forward.1} parent=11 // pred_check_branch
          %145 = sbr.rel (%p143) target = $region16
        $region15: #{net_forward.1} parent=11 // pred_region
          _
        $region16: #{net_forward.1} parent=11 // pred_fallthru
          _
        // Predicated region
        $region17: #{net_forward.1} parent=11 // pred_check
          %p146 = pneg %p81
        $region18: #{net_forward.1} parent=11 // pred_check_branch
          %148 = sbr.rel (%p146) target = $region20
        $region19: #{net_forward.1} parent=11 // pred_region
          _
        $region20: #{net_forward.1} parent=11 // pred_fallthru
          _
        // Predicated region
        $region21: #{net_forward.1} parent=11 // pred_check
          %p149 = pneg %p102
        $region22: #{net_forward.1} parent=11 // pred_check_branch
          %151 = sbr.rel (%p149) target = $region24
        $region23: #{net_forward.1} parent=11 // pred_region
          _
        $region24: #{net_forward.1} parent=11 // pred_fallthru
          _
      $region12: #{net_forward.1} parent=5 // pred_fallthru
        _
      %p152 = scmp.lt.s32.totalorder %s13, 4
      // Predicated region
      $region25: #{net_forward.1} parent=5 // pred_check
        %p153 = pneg %p152
      $region26: #{net_forward.1} parent=5 // pred_check_branch
        %155 = sbr.rel (%p153) target = $region28
      $region27: #{net_forward.1} parent=5 // pred_region
        // Predicated region
        $region29: #{net_forward.1} parent=27 // pred_check
          %p156 = pneg %p33
        $region30: #{net_forward.1} parent=27 // pred_check_branch
          %158 = sbr.rel (%p156) target = $region32
        $region31: #{net_forward.1} parent=27 // pred_region
          %p159 = scmp.lt.s32.totalorder %s13, 3
          %s160 = scalar_select %p159, %s13, 3
          %s161 = smul.addr %s160, 8
          %s162 = scalar_lea.vmem %s0, %s161
        $region32: #{net_forward.1} parent=27 // pred_fallthru
          _
      $region28: #{net_forward.1} parent=5 // pred_fallthru
        _
      %p163 = scmp.le.s32.totalorder 1, %s13
      %p164 = scmp.lt.s32.totalorder %s13, 5
      %p165 = pnand %p163, %p164
      %p166 = pneg %p165
      // Predicated region
      $region33: #{net_forward.1} parent=5 // pred_check
        _
      $region34: #{net_forward.1} parent=5 // pred_check_branch
        %168 = sbr.rel (%p165) target = $region36
      $region35: #{net_forward.1} parent=5 // pred_region
        %s169 = ssub.s32 %s13, 1
        %p170 = scmp.lt.s32.totalorder %s18, 3
        %s171 = scalar_select %p170, %s18, 3
        %s172 = smul.addr %s171, 8
        %s173 = scalar_lea.vmem %s0, %s172
        %p174 = pneg %p39
        %p175 = pneg %p36
        %p176 = pneg %p60
        %p177 = pneg %p57
        %p178 = pneg %p81
        %p179 = pneg %p78
        %p180 = pneg %p102
        %p181 = pneg %p99
        %p182 = pneg %p128
        %p183 = pneg %p125
        %s184 = sand.u32 %s115, 1
        %s185 = scalar_lea.sflag [#allocation3], %s184
        %s186 = sand.u32 %s115, 1
        %s187 = smul.addr %s186, 8
        %s188 = scalar_lea.vmem [#allocation2], %s187
        %p189 = scmp.lt.s32.totalorder %s18, 3
        %s190 = scalar_select %p189, %s18, 3
        %s191 = smul.addr %s190, 8
        %s192 = scalar_lea.vmem %s0, %s191
        %v193 = vld [vmem:[%s192] sm:$0xff]
        %v194 = vld [vmem:[%s1] sm:$0xff]
        %v195 = vld [vmem:[%s1 + $0x8] sm:$0xff]
        %v196 = vld [vmem:[%s3] sm:$0xff]
        %v197 = vld [vmem:[%s3 + $0x8] sm:$0xff]
        %v198 = vld [vmem:[%s3 + $0x10] sm:$0xff]
        %v199 = vld [vmem:[%s3 + $0x18] sm:$0xff]
        %v200 = vld [vmem:[%s3 + $0x20] sm:$0xff]
        %v201 = vld [vmem:[%s3 + $0x28] sm:$0xff]
        %v202 = vld [vmem:[%s3 + $0x30] sm:$0xff]
        %v203 = vld [vmem:[%s3 + $0x38] sm:$0xff]
        %v204 = vld [vmem:[%s2] sm:$0xff]
        %v205 = vld [vmem:[%s2 + $0x8] sm:$0xff]
        %v206 = vld [vmem:[%s2 + $0x10] sm:$0xff]
        %v207 = vld [vmem:[%s2 + $0x18] sm:$0xff]
        %v208 = vld [vmem:[%s2 + $0x20] sm:$0xff]
        %v209 = vld [vmem:[%s2 + $0x28] sm:$0xff]
        %v210 = vld [vmem:[%s2 + $0x30] sm:$0xff]
        %v211 = vld [vmem:[%s2 + $0x38] sm:$0xff]
        %v212 = vld [vmem:[%s2 + $0x40] sm:$0xff]
        %v213 = vld [vmem:[%s2 + $0x48] sm:$0xff]
        %v214 = vld [vmem:[%s2 + $0x50] sm:$0xff]
        %v215 = vld [vmem:[%s2 + $0x58] sm:$0xff]
        %v216 = vld [vmem:[%s2 + $0x60] sm:$0xff]
        %v217 = vld [vmem:[%s2 + $0x68] sm:$0xff]
        %v218 = vld [vmem:[%s2 + $0x70] sm:$0xff]
        %v219 = vld [vmem:[%s2 + $0x78] sm:$0xff]
        %v220 = vld [vmem:[%s2 + $0x80] sm:$0xff]
        %v221 = vld [vmem:[%s2 + $0x88] sm:$0xff]
        %v222 = vld [vmem:[%s2 + $0x90] sm:$0xff]
        %v223 = vld [vmem:[%s2 + $0x98] sm:$0xff]
        %v224 = vld [vmem:[%s2 + $0xa0] sm:$0xff]
        %v225 = vld [vmem:[%s2 + $0xa8] sm:$0xff]
        %v226 = vld [vmem:[%s2 + $0xb0] sm:$0xff]
        %v227 = vld [vmem:[%s2 + $0xb8] sm:$0xff]
        %v228 = vld [vmem:[%s2 + $0xc0] sm:$0xff]
        %v229 = vld [vmem:[%s2 + $0xc8] sm:$0xff]
        %v230 = vld [vmem:[%s2 + $0xd0] sm:$0xff]
        %v231 = vld [vmem:[%s2 + $0xd8] sm:$0xff]
        %v232 = vld [vmem:[%s2 + $0xe0] sm:$0xff]
        %v233 = vld [vmem:[%s2 + $0xe8] sm:$0xff]
        %v234 = vld [vmem:[%s2 + $0xf0] sm:$0xff]
        %v235 = vld [vmem:[%s2 + $0xf8] sm:$0xff]
        %v236 = vld [vmem:[%s2 + $0x100] sm:$0xff]
        %v237 = vld [vmem:[%s2 + $0x108] sm:$0xff]
        %v238 = vld [vmem:[%s2 + $0x110] sm:$0xff]
        %v239 = vld [vmem:[%s2 + $0x118] sm:$0xff]
        %v240 = vld [vmem:[%s2 + $0x120] sm:$0xff]
        %v241 = vld [vmem:[%s2 + $0x128] sm:$0xff]
        %v242 = vld [vmem:[%s2 + $0x130] sm:$0xff]
        %v243 = vld [vmem:[%s2 + $0x138] sm:$0xff]
        %v244 = vld [vmem:[%s2 + $0x140] sm:$0xff]
        %v245 = vld [vmem:[%s2 + $0x148] sm:$0xff]
        %v246 = vld [vmem:[%s2 + $0x150] sm:$0xff]
        %v247 = vld [vmem:[%s2 + $0x158] sm:$0xff]
        %v248 = vld [vmem:[%s2 + $0x160] sm:$0xff]
        %v249 = vld [vmem:[%s2 + $0x168] sm:$0xff]
        %v250 = vld [vmem:[%s2 + $0x170] sm:$0xff]
        %v251 = vld [vmem:[%s2 + $0x178] sm:$0xff]
        %v252 = vld [vmem:[%s2 + $0x180] sm:$0xff]
        %v253 = vld [vmem:[%s2 + $0x188] sm:$0xff]
        %v254 = vld [vmem:[%s2 + $0x190] sm:$0xff]
        %v255 = vld [vmem:[%s2 + $0x198] sm:$0xff]
        %v256 = vld [vmem:[%s2 + $0x1a0] sm:$0xff]
        %v257 = vld [vmem:[%s2 + $0x1a8] sm:$0xff]
        %v258 = vld [vmem:[%s2 + $0x1b0] sm:$0xff]
        %v259 = vld [vmem:[%s2 + $0x1b8] sm:$0xff]
        %v260 = vrot.slane %v193, 4
        %v261 = vadd.f32 %v193, %v260
        %v262 = vrot.slane %v261, 2
        %v263 = vadd.f32 %v261, %v262
        %v264 = vrot.slane %v263, 1
        %v265 = vadd.f32 %v263, %v264
        %v266 = vmul.f32 %v193, %v193
        %v267 = vrot.slane %v266, 4
        %v268 = vadd.f32 %v266, %v267
        %v269 = vrot.slane %v268, 2
        %v270 = vadd.f32 %v268, %v269
        %v271 = vrot.slane %v270, 1
        %v272 = vadd.f32 %v270, %v271
        %v273 = vmul.f32 %v265, 0.125
        %v274 = vmul.f32 %v272, 0.125
        %v275 = vmul.f32 %v273, %v273
        %v276 = vsub.f32 %v274, %v275
        %v277 = vmax.f32 %v276, 0.0
        %v278 = vadd.f32 %v277, 1e-05
        %v279 = vrsqrt.pop %v278
        %v280 = vmul.f32 %v279, %v278
        %v281 = vmul.f32 %v280, %v279
        %v282 = vmul.f32 0.5, %v281
        %v283 = vsub.f32 1.5, %v282
        %v284 = vmul.f32 %v279, %v283
        %vm285 = vweird.f32 %v278
        %vm286 = vweird.f32 %v279
        %vm287 = vmor %vm285, %vm286
        %v288 = vsel %vm287, %v279, %v284
        %v289 = vsub.f32 %v193, %v273
        %v290 = vmul.f32 %v289, %v288
        %v291 = vperm.slane %v194, 0
        %v292 = vmul.f32 %v290, %v291
        %v293 = vperm.slane %v194, 1
        %v294 = vadd.f32 %v292, %v293
        %v296 = vrot.slane %v194, 1
        %vm298 = vcmask 1040384
        %v299 = vsel %vm298, %v296, 0.0
        %300 = vadd.xlane.f32.xlu0 %v299
        %v301 = vpop.xlane.xlu0 %300
        %v302 = vrot.slane %v301, 4
        %v303 = vadd.f32 %v301, %v302
        %v304 = vrot.slane %v303, 2
        %v305 = vadd.f32 %v303, %v304
        %v306 = vrot.slane %v305, 1
        %v307 = vadd.f32 %v305, %v306
        %s308 = vtos %v307
        %s309 = smul.f32 %s308, 0.0078125
        %v310 = vmul.f32 %v194, %v194
        %v311 = vmul.f32 %v277, %v288
        %v312 = vmul.f32 %v311, %v288
        %v313 = vmul.f32 %v310, %v312
        %v315 = vrot.slane %v310, 1
        %v317 = vadd.f32 %v313, %v315
        %v318 = vsel %vm298, %v317, 0.0
        %319 = vadd.xlane.f32.xlu0 %v318
        %v320 = vpop.xlane.xlu0 %319
        %v321 = vrot.slane %v320, 4
        %v322 = vadd.f32 %v320, %v321
        %v323 = vrot.slane %v322, 2
        %v324 = vadd.f32 %v322, %v323
        %v325 = vrot.slane %v324, 1
        %v326 = vadd.f32 %v324, %v325
        %s327 = vtos %v326
        %s328 = smul.f32 %s327, 0.0078125
        %s329 = smul.f32 %s309, %s309
        %s330 = ssub.f32 %s328, %s329
        %s331 = smax.f32 %s330, 0.0
        %340 = vrot.lane.b32.xlu0 %v196, 127
        %v341 = vpop.permute.xlu0 %340
        %342 = vrot.lane.b32.xlu0 %v197, 127
        %v343 = vpop.permute.xlu0 %342
        %344 = vrot.lane.b32.xlu0 %v198, 127
        %v345 = vpop.permute.xlu0 %344
        %346 = vrot.lane.b32.xlu0 %v199, 127
        %v347 = vpop.permute.xlu0 %346
        %348 = vrot.lane.b32.xlu0 %v200, 127
        %v349 = vpop.permute.xlu0 %348
        %350 = vrot.lane.b32.xlu0 %v201, 127
        %v351 = vpop.permute.xlu0 %350
        %352 = vrot.lane.b32.xlu0 %v202, 127
        %v353 = vpop.permute.xlu0 %352
        %354 = vrot.lane.b32.xlu0 %v203, 127
        %v355 = vpop.permute.xlu0 %354
        %v364 = vmul.f32 %v196, %v341
        %v365 = vmul.f32 %v197, %v343
        %v366 = vmul.f32 %v198, %v345
        %v367 = vmul.f32 %v199, %v347
        %v368 = vmul.f32 %v200, %v349
        %v369 = vmul.f32 %v201, %v351
        %v370 = vmul.f32 %v202, %v353
        %v371 = vmul.f32 %v203, %v355
        %v372 = vmul.f32 %v196, %v196
        %v373 = vmul.f32 %v197, %v197
        %v374 = vmul.f32 %v198, %v198
        %v375 = vmul.f32 %v199, %v199
        %v376 = vmul.f32 %v200, %v200
        %v377 = vmul.f32 %v201, %v201
        %v378 = vmul.f32 %v202, %v202
        %v379 = vmul.f32 %v203, %v203
        %v380 = vstv %s331
        %v381 = vmul.f32 %v372, %v380
        %v382 = vmul.f32 %v373, %v380
        %v383 = vmul.f32 %v374, %v380
        %v384 = vmul.f32 %v375, %v380
        %v385 = vmul.f32 %v376, %v380
        %v386 = vmul.f32 %v377, %v380
        %v387 = vmul.f32 %v378, %v380
        %v388 = vmul.f32 %v379, %v380
        %v389 = vadd.f32 %v381, 1e-05
        %v390 = vadd.f32 %v382, 1e-05
        %v391 = vadd.f32 %v383, 1e-05
        %v392 = vadd.f32 %v384, 1e-05
        %v393 = vadd.f32 %v385, 1e-05
        %v394 = vadd.f32 %v386, 1e-05
        %v395 = vadd.f32 %v387, 1e-05
        %v396 = vadd.f32 %v388, 1e-05
        %v397 = vrsqrt.pop %v389
        %v398 = vmul.f32 %v397, %v389
        %v399 = vmul.f32 %v398, %v397
        %v400 = vmul.f32 0.5, %v399
        %v401 = vsub.f32 1.5, %v400
        %v402 = vmul.f32 %v397, %v401
        %vm403 = vweird.f32 %v389
        %vm404 = vweird.f32 %v397
        %vm405 = vmor %vm403, %vm404
        %v406 = vsel %vm405, %v397, %v402
        %v407 = vrsqrt.pop %v390
        %v408 = vmul.f32 %v407, %v390
        %v409 = vmul.f32 %v408, %v407
        %v410 = vmul.f32 0.5, %v409
        %v411 = vsub.f32 1.5, %v410
        %v412 = vmul.f32 %v407, %v411
        %vm413 = vweird.f32 %v390
        %vm414 = vweird.f32 %v407
        %vm415 = vmor %vm413, %vm414
        %v416 = vsel %vm415, %v407, %v412
        %v417 = vrsqrt.pop %v391
        %v418 = vmul.f32 %v417, %v391
        %v419 = vmul.f32 %v418, %v417
        %v420 = vmul.f32 0.5, %v419
        %v421 = vsub.f32 1.5, %v420
        %v422 = vmul.f32 %v417, %v421
        %vm423 = vweird.f32 %v391
        %vm424 = vweird.f32 %v417
        %vm425 = vmor %vm423, %vm424
        %v426 = vsel %vm425, %v417, %v422
        %v427 = vrsqrt.pop %v392
        %v428 = vmul.f32 %v427, %v392
        %v429 = vmul.f32 %v428, %v427
        %v430 = vmul.f32 0.5, %v429
        %v431 = vsub.f32 1.5, %v430
        %v432 = vmul.f32 %v427, %v431
        %vm433 = vweird.f32 %v392
        %vm434 = vweird.f32 %v427
        %vm435 = vmor %vm433, %vm434
        %v436 = vsel %vm435, %v427, %v432
        %v437 = vrsqrt.pop %v393
        %v438 = vmul.f32 %v437, %v393
        %v439 = vmul.f32 %v438, %v437
        %v440 = vmul.f32 0.5, %v439
        %v441 = vsub.f32 1.5, %v440
        %v442 = vmul.f32 %v437, %v441
        %vm443 = vweird.f32 %v393
        %vm444 = vweird.f32 %v437
        %vm445 = vmor %vm443, %vm444
        %v446 = vsel %vm445, %v437, %v442
        %v447 = vrsqrt.pop %v394
        %v448 = vmul.f32 %v447, %v394
        %v449 = vmul.f32 %v448, %v447
        %v450 = vmul.f32 0.5, %v449
        %v451 = vsub.f32 1.5, %v450
        %v452 = vmul.f32 %v447, %v451
        %vm453 = vweird.f32 %v394
        %vm454 = vweird.f32 %v447
        %vm455 = vmor %vm453, %vm454
        %v456 = vsel %vm455, %v447, %v452
        %v457 = vrsqrt.pop %v395
        %v458 = vmul.f32 %v457, %v395
        %v459 = vmul.f32 %v458, %v457
        %v460 = vmul.f32 0.5, %v459
        %v461 = vsub.f32 1.5, %v460
        %v462 = vmul.f32 %v457, %v461
        %vm463 = vweird.f32 %v395
        %vm464 = vweird.f32 %v457
        %vm465 = vmor %vm463, %vm464
        %v466 = vsel %vm465, %v457, %v462
        %v467 = vrsqrt.pop %v396
        %v468 = vmul.f32 %v467, %v396
        %v469 = vmul.f32 %v468, %v467
        %v470 = vmul.f32 0.5, %v469
        %v471 = vsub.f32 1.5, %v470
        %v472 = vmul.f32 %v467, %v471
        %vm473 = vweird.f32 %v396
        %vm474 = vweird.f32 %v467
        %vm475 = vmor %vm473, %vm474
        %v476 = vsel %vm475, %v467, %v472
        %v477 = vmul.f32 %v364, %v406
        %v478 = vmul.f32 %v365, %v416
        %v479 = vmul.f32 %v366, %v426
        %v480 = vmul.f32 %v367, %v436
        %v481 = vmul.f32 %v368, %v446
        %v482 = vmul.f32 %v369, %v456
        %v483 = vmul.f32 %v370, %v466
        %v484 = vmul.f32 %v371, %v476
        %v485 = vstv %s309
        %v486 = vmul.f32 %v485, %v477
        %v487 = vmul.f32 %v485, %v478
        %v488 = vmul.f32 %v485, %v479
        %v489 = vmul.f32 %v485, %v480
        %v490 = vmul.f32 %v485, %v481
        %v491 = vmul.f32 %v485, %v482
        %v492 = vmul.f32 %v485, %v483
        %v493 = vmul.f32 %v485, %v484
        %502 = vrot.lane.b32.xlu0 %v486, 2
        %v503 = vpop.permute.xlu0 %502
        %504 = vrot.lane.b32.xlu0 %v487, 2
        %v505 = vpop.permute.xlu0 %504
        %506 = vrot.lane.b32.xlu0 %v488, 2
        %v507 = vpop.permute.xlu0 %506
        %508 = vrot.lane.b32.xlu0 %v489, 2
        %v509 = vpop.permute.xlu0 %508
        %510 = vrot.lane.b32.xlu0 %v490, 2
        %v511 = vpop.permute.xlu0 %510
        %512 = vrot.lane.b32.xlu0 %v491, 2
        %v513 = vpop.permute.xlu0 %512
        %514 = vrot.lane.b32.xlu0 %v492, 2
        %v515 = vpop.permute.xlu0 %514
        %516 = vrot.lane.b32.xlu0 %v493, 2
        %v517 = vpop.permute.xlu0 %516
        %v526 = vsub.f32 %v196, %v503
        %v527 = vsub.f32 %v197, %v505
        %v528 = vsub.f32 %v198, %v507
        %v529 = vsub.f32 %v199, %v509
        %v530 = vsub.f32 %v200, %v511
        %v531 = vsub.f32 %v201, %v513
        %v532 = vsub.f32 %v202, %v515
        %v533 = vsub.f32 %v203, %v517
        %v535 = vrot.slane %v294, 1
        %v536 = vrot.slane %v294, 2
        %v537 = vrot.slane %v294, 3
        %v538 = vrot.slane %v294, 4
        %v539 = vrot.slane %v294, 5
        %v540 = vrot.slane %v294, 6
        %v541 = vrot.slane %v294, 7
        %v542 = vperm.slane %v294, 0
        %v543 = vperm.slane %v535, 0
        %v544 = vperm.slane %v536, 0
        %v545 = vperm.slane %v537, 0
        %v546 = vperm.slane %v538, 0
        %v547 = vperm.slane %v539, 0
        %v548 = vperm.slane %v540, 0
        %v549 = vperm.slane %v541, 0
        %559 = vset.pattern.permute.xlu0 0
        %560 = vperm.xlu0 %559, %v477
        %v561 = vpop.permute.xlu0 %560
        %564 = vset.pattern.permute.xlu0 0
        %565 = vperm.xlu0 %564, %v478
        %v566 = vpop.permute.xlu0 %565
        %569 = vset.pattern.permute.xlu0 0
        %570 = vperm.xlu0 %569, %v479
        %v571 = vpop.permute.xlu0 %570
        %574 = vset.pattern.permute.xlu0 0
        %575 = vperm.xlu0 %574, %v480
        %v576 = vpop.permute.xlu0 %575
        %579 = vset.pattern.permute.xlu0 0
        %580 = vperm.xlu0 %579, %v481
        %v581 = vpop.permute.xlu0 %580
        %584 = vset.pattern.permute.xlu0 0
        %585 = vperm.xlu0 %584, %v482
        %v586 = vpop.permute.xlu0 %585
        %589 = vset.pattern.permute.xlu0 0
        %590 = vperm.xlu0 %589, %v483
        %v591 = vpop.permute.xlu0 %590
        %594 = vset.pattern.permute.xlu0 0
        %595 = vperm.xlu0 %594, %v484
        %v596 = vpop.permute.xlu0 %595
        %v598 = vmul.f32 %v542, %v561
        %v599 = vmul.f32 %v542, %v566
        %v600 = vmul.f32 %v542, %v571
        %v601 = vmul.f32 %v542, %v576
        %v602 = vmul.f32 %v542, %v581
        %v603 = vmul.f32 %v542, %v586
        %v604 = vmul.f32 %v542, %v591
        %v605 = vmul.f32 %v542, %v596
        %v606 = vmul.f32 %v543, %v561
        %v607 = vmul.f32 %v543, %v566
        %v608 = vmul.f32 %v543, %v571
        %v609 = vmul.f32 %v543, %v576
        %v610 = vmul.f32 %v543, %v581
        %v611 = vmul.f32 %v543, %v586
        %v612 = vmul.f32 %v543, %v591
        %v613 = vmul.f32 %v543, %v596
        %v614 = vmul.f32 %v544, %v561
        %v615 = vmul.f32 %v544, %v566
        %v616 = vmul.f32 %v544, %v571
        %v617 = vmul.f32 %v544, %v576
        %v618 = vmul.f32 %v544, %v581
        %v619 = vmul.f32 %v544, %v586
        %v620 = vmul.f32 %v544, %v591
        %v621 = vmul.f32 %v544, %v596
        %v622 = vmul.f32 %v545, %v561
        %v623 = vmul.f32 %v545, %v566
        %v624 = vmul.f32 %v545, %v571
        %v625 = vmul.f32 %v545, %v576
        %v626 = vmul.f32 %v545, %v581
        %v627 = vmul.f32 %v545, %v586
        %v628 = vmul.f32 %v545, %v591
        %v629 = vmul.f32 %v545, %v596
        %v630 = vmul.f32 %v546, %v561
        %v631 = vmul.f32 %v546, %v566
        %v632 = vmul.f32 %v546, %v571
        %v633 = vmul.f32 %v546, %v576
        %v634 = vmul.f32 %v546, %v581
        %v635 = vmul.f32 %v546, %v586
        %v636 = vmul.f32 %v546, %v591
        %v637 = vmul.f32 %v546, %v596
        %v638 = vmul.f32 %v547, %v561
        %v639 = vmul.f32 %v547, %v566
        %v640 = vmul.f32 %v547, %v571
        %v641 = vmul.f32 %v547, %v576
        %v642 = vmul.f32 %v547, %v581
        %v643 = vmul.f32 %v547, %v586
        %v644 = vmul.f32 %v547, %v591
        %v645 = vmul.f32 %v547, %v596
        %v646 = vmul.f32 %v548, %v561
        %v647 = vmul.f32 %v548, %v566
        %v648 = vmul.f32 %v548, %v571
        %v649 = vmul.f32 %v548, %v576
        %v650 = vmul.f32 %v548, %v581
        %v651 = vmul.f32 %v548, %v586
        %v652 = vmul.f32 %v548, %v591
        %v653 = vmul.f32 %v548, %v596
        %v654 = vmul.f32 %v549, %v561
        %v655 = vmul.f32 %v549, %v566
        %v656 = vmul.f32 %v549, %v571
        %v657 = vmul.f32 %v549, %v576
        %v658 = vmul.f32 %v549, %v581
        %v659 = vmul.f32 %v549, %v586
        %v660 = vmul.f32 %v549, %v591
        %v661 = vmul.f32 %v549, %v596
        %663 = vset.pattern.permute.xlu0 2
        %664 = vperm.xlu0 %663, %v526
        %v665 = vpop.permute.xlu0 %664
        %668 = vset.pattern.permute.xlu0 2
        %669 = vperm.xlu0 %668, %v527
        %v670 = vpop.permute.xlu0 %669
        %673 = vset.pattern.permute.xlu0 2
        %674 = vperm.xlu0 %673, %v528
        %v675 = vpop.permute.xlu0 %674
        %678 = vset.pattern.permute.xlu0 2
        %679 = vperm.xlu0 %678, %v529
        %v680 = vpop.permute.xlu0 %679
        %683 = vset.pattern.permute.xlu0 2
        %684 = vperm.xlu0 %683, %v530
        %v685 = vpop.permute.xlu0 %684
        %688 = vset.pattern.permute.xlu0 2
        %689 = vperm.xlu0 %688, %v531
        %v690 = vpop.permute.xlu0 %689
        %693 = vset.pattern.permute.xlu0 2
        %694 = vperm.xlu0 %693, %v532
        %v695 = vpop.permute.xlu0 %694
        %698 = vset.pattern.permute.xlu0 2
        %699 = vperm.xlu0 %698, %v533
        %v700 = vpop.permute.xlu0 %699
        %v702 = vadd.f32 %v598, %v665
        %v703 = vadd.f32 %v599, %v670
        %v704 = vadd.f32 %v600, %v675
        %v705 = vadd.f32 %v601, %v680
        %v706 = vadd.f32 %v602, %v685
        %v707 = vadd.f32 %v603, %v690
        %v708 = vadd.f32 %v604, %v695
        %v709 = vadd.f32 %v605, %v700
        %v710 = vadd.f32 %v606, %v665
        %v711 = vadd.f32 %v607, %v670
        %v712 = vadd.f32 %v608, %v675
        %v713 = vadd.f32 %v609, %v680
        %v714 = vadd.f32 %v610, %v685
        %v715 = vadd.f32 %v611, %v690
        %v716 = vadd.f32 %v612, %v695
        %v717 = vadd.f32 %v613, %v700
        %v718 = vadd.f32 %v614, %v665
        %v719 = vadd.f32 %v615, %v670
        %v720 = vadd.f32 %v616, %v675
        %v721 = vadd.f32 %v617, %v680
        %v722 = vadd.f32 %v618, %v685
        %v723 = vadd.f32 %v619, %v690
        %v724 = vadd.f32 %v620, %v695
        %v725 = vadd.f32 %v621, %v700
        %v726 = vadd.f32 %v622, %v665
        %v727 = vadd.f32 %v623, %v670
        %v728 = vadd.f32 %v624, %v675
        %v729 = vadd.f32 %v625, %v680
        %v730 = vadd.f32 %v626, %v685
        %v731 = vadd.f32 %v627, %v690
        %v732 = vadd.f32 %v628, %v695
        %v733 = vadd.f32 %v629, %v700
        %v734 = vadd.f32 %v630, %v665
        %v735 = vadd.f32 %v631, %v670
        %v736 = vadd.f32 %v632, %v675
        %v737 = vadd.f32 %v633, %v680
        %v738 = vadd.f32 %v634, %v685
        %v739 = vadd.f32 %v635, %v690
        %v740 = vadd.f32 %v636, %v695
        %v741 = vadd.f32 %v637, %v700
        %v742 = vadd.f32 %v638, %v665
        %v743 = vadd.f32 %v639, %v670
        %v744 = vadd.f32 %v640, %v675
        %v745 = vadd.f32 %v641, %v680
        %v746 = vadd.f32 %v642, %v685
        %v747 = vadd.f32 %v643, %v690
        %v748 = vadd.f32 %v644, %v695
        %v749 = vadd.f32 %v645, %v700
        %v750 = vadd.f32 %v646, %v665
        %v751 = vadd.f32 %v647, %v670
        %v752 = vadd.f32 %v648, %v675
        %v753 = vadd.f32 %v649, %v680
        %v754 = vadd.f32 %v650, %v685
        %v755 = vadd.f32 %v651, %v690
        %v756 = vadd.f32 %v652, %v695
        %v757 = vadd.f32 %v653, %v700
        %v758 = vadd.f32 %v654, %v665
        %v759 = vadd.f32 %v655, %v670
        %v760 = vadd.f32 %v656, %v675
        %v761 = vadd.f32 %v657, %v680
        %v762 = vadd.f32 %v658, %v685
        %v763 = vadd.f32 %v659, %v690
        %v764 = vadd.f32 %v660, %v695
        %v765 = vadd.f32 %v661, %v700
        %v766 = vmax.f32 %v702, 0.0
        %v767 = vmax.f32 %v703, 0.0
        %v768 = vmax.f32 %v704, 0.0
        %v769 = vmax.f32 %v705, 0.0
        %v770 = vmax.f32 %v706, 0.0
        %v771 = vmax.f32 %v707, 0.0
        %v772 = vmax.f32 %v708, 0.0
        %v773 = vmax.f32 %v709, 0.0
        %v774 = vmax.f32 %v710, 0.0
        %v775 = vmax.f32 %v711, 0.0
        %v776 = vmax.f32 %v712, 0.0
        %v777 = vmax.f32 %v713, 0.0
        %v778 = vmax.f32 %v714, 0.0
        %v779 = vmax.f32 %v715, 0.0
        %v780 = vmax.f32 %v716, 0.0
        %v781 = vmax.f32 %v717, 0.0
        %v782 = vmax.f32 %v718, 0.0
        %v783 = vmax.f32 %v719, 0.0
        %v784 = vmax.f32 %v720, 0.0
        %v785 = vmax.f32 %v721, 0.0
        %v786 = vmax.f32 %v722, 0.0
        %v787 = vmax.f32 %v723, 0.0
        %v788 = vmax.f32 %v724, 0.0
        %v789 = vmax.f32 %v725, 0.0
        %v790 = vmax.f32 %v726, 0.0
        %v791 = vmax.f32 %v727, 0.0
        %v792 = vmax.f32 %v728, 0.0
        %v793 = vmax.f32 %v729, 0.0
        %v794 = vmax.f32 %v730, 0.0
        %v795 = vmax.f32 %v731, 0.0
        %v796 = vmax.f32 %v732, 0.0
        %v797 = vmax.f32 %v733, 0.0
        %v798 = vmax.f32 %v734, 0.0
        %v799 = vmax.f32 %v735, 0.0
        %v800 = vmax.f32 %v736, 0.0
        %v801 = vmax.f32 %v737, 0.0
        %v802 = vmax.f32 %v738, 0.0
        %v803 = vmax.f32 %v739, 0.0
        %v804 = vmax.f32 %v740, 0.0
        %v805 = vmax.f32 %v741, 0.0
        %v806 = vmax.f32 %v742, 0.0
        %v807 = vmax.f32 %v743, 0.0
        %v808 = vmax.f32 %v744, 0.0
        %v809 = vmax.f32 %v745, 0.0
        %v810 = vmax.f32 %v746, 0.0
        %v811 = vmax.f32 %v747, 0.0
        %v812 = vmax.f32 %v748, 0.0
        %v813 = vmax.f32 %v749, 0.0
        %v814 = vmax.f32 %v750, 0.0
        %v815 = vmax.f32 %v751, 0.0
        %v816 = vmax.f32 %v752, 0.0
        %v817 = vmax.f32 %v753, 0.0
        %v818 = vmax.f32 %v754, 0.0
        %v819 = vmax.f32 %v755, 0.0
        %v820 = vmax.f32 %v756, 0.0
        %v821 = vmax.f32 %v757, 0.0
        %v822 = vmax.f32 %v758, 0.0
        %v823 = vmax.f32 %v759, 0.0
        %v824 = vmax.f32 %v760, 0.0
        %v825 = vmax.f32 %v761, 0.0
        %v826 = vmax.f32 %v762, 0.0
        %v827 = vmax.f32 %v763, 0.0
        %v828 = vmax.f32 %v764, 0.0
        %v829 = vmax.f32 %v765, 0.0
        %vm830 = vcmask 523264
        %v832 = vsel %vm830, %v220, 0
        %v835 = vsel %vm830, %v221, 0
        %v838 = vsel %vm830, %v222, 0
        %v841 = vsel %vm830, %v223, 0
        %v844 = vsel %vm830, %v224, 0
        %v847 = vsel %vm830, %v225, 0
        %v850 = vsel %vm830, %v226, 0
        %v853 = vsel %vm830, %v227, 0
        %855 = vmatpush.msra.mxu0 0.0
        %856 = vmatpush.msra.mxu0 0.0
        %857 = vmatpush.msra.mxu0 0.0
        %858 = vmatpush.msra.mxu0 0.0
        %859 = vmatpush.msra.mxu0 0.0
        %860 = vmatpush.msra.mxu0 0.0
        %861 = vmatpush.msra.mxu0 0.0
        %862 = vmatpush.msra.mxu0 0.0
        %863 = vmatpush.msra.mxu0 %v773
        %864 = vmatpush.msra.mxu0 %v772
        %865 = vmatpush.msra.mxu0 %v771
        %866 = vmatpush.msra.mxu0 %v770
        %867 = vmatpush.msra.mxu0 %v769
        %868 = vmatpush.msra.mxu0 %v768
        %869 = vmatpush.msra.mxu0 %v767
        %870 = vmatpush.msra.mxu0 %v766
        %871 = vmatmul.f32.gmra.mxu0 %v832
        %v872 = vpop.f32.mrf.mxu0
        %v873 = vadd.f32 0.0, %v872
        %874 = vmatmul.f32.gmra.mxu0 %v835
        %v875 = vpop.f32.mrf.mxu0
        %v876 = vadd.f32 0.0, %v875
        %877 = vmatmul.f32.gmra.mxu0 %v838
        %v878 = vpop.f32.mrf.mxu0
        %v879 = vadd.f32 0.0, %v878
        %880 = vmatmul.f32.gmra.mxu0 %v841
        %v881 = vpop.f32.mrf.mxu0
        %v882 = vadd.f32 0.0, %v881
        %883 = vmatmul.f32.gmra.mxu0 %v844
        %v884 = vpop.f32.mrf.mxu0
        %v885 = vadd.f32 0.0, %v884
        %886 = vmatmul.f32.gmra.mxu0 %v847
        %v887 = vpop.f32.mrf.mxu0
        %v888 = vadd.f32 0.0, %v887
        %889 = vmatmul.f32.gmra.mxu0 %v850
        %v890 = vpop.f32.mrf.mxu0
        %v891 = vadd.f32 0.0, %v890
        %892 = vmatmul.f32.gmra.mxu0 %v853
        %v893 = vpop.f32.mrf.mxu0
        %v894 = vadd.f32 0.0, %v893
        %895 = vdwg.mxu0
        %896 = vmatpush.msra.mxu0 0.0
        %897 = vmatpush.msra.mxu0 0.0
        %898 = vmatpush.msra.mxu0 0.0
        %899 = vmatpush.msra.mxu0 0.0
        %900 = vmatpush.msra.mxu0 0.0
        %901 = vmatpush.msra.mxu0 0.0
        %902 = vmatpush.msra.mxu0 0.0
        %903 = vmatpush.msra.mxu0 0.0
        %904 = vmatpush.msra.mxu0 %v781
        %905 = vmatpush.msra.mxu0 %v780
        %906 = vmatpush.msra.mxu0 %v779
        %907 = vmatpush.msra.mxu0 %v778
        %908 = vmatpush.msra.mxu0 %v777
        %909 = vmatpush.msra.mxu0 %v776
        %910 = vmatpush.msra.mxu0 %v775
        %911 = vmatpush.msra.mxu0 %v774
        %912 = vmatmul.f32.gmra.mxu0 %v832
        %v913 = vpop.f32.mrf.mxu0
        %v914 = vadd.f32 0.0, %v913
        %915 = vmatmul.f32.gmra.mxu0 %v835
        %v916 = vpop.f32.mrf.mxu0
        %v917 = vadd.f32 0.0, %v916
        %918 = vmatmul.f32.gmra.mxu0 %v838
        %v919 = vpop.f32.mrf.mxu0
        %v920 = vadd.f32 0.0, %v919
        %921 = vmatmul.f32.gmra.mxu0 %v841
        %v922 = vpop.f32.mrf.mxu0
        %v923 = vadd.f32 0.0, %v922
        %924 = vmatmul.f32.gmra.mxu0 %v844
        %v925 = vpop.f32.mrf.mxu0
        %v926 = vadd.f32 0.0, %v925
        %927 = vmatmul.f32.gmra.mxu0 %v847
        %v928 = vpop.f32.mrf.mxu0
        %v929 = vadd.f32 0.0, %v928
        %930 = vmatmul.f32.gmra.mxu0 %v850
        %v931 = vpop.f32.mrf.mxu0
        %v932 = vadd.f32 0.0, %v931
        %933 = vmatmul.f32.gmra.mxu0 %v853
        %v934 = vpop.f32.mrf.mxu0
        %v935 = vadd.f32 0.0, %v934
        %936 = vdwg.mxu0
        %937 = vmatpush.msra.mxu0 0.0
        %938 = vmatpush.msra.mxu0 0.0
        %939 = vmatpush.msra.mxu0 0.0
        %940 = vmatpush.msra.mxu0 0.0
        %941 = vmatpush.msra.mxu0 0.0
        %942 = vmatpush.msra.mxu0 0.0
        %943 = vmatpush.msra.mxu0 0.0
        %944 = vmatpush.msra.mxu0 0.0
        %945 = vmatpush.msra.mxu0 %v789
        %946 = vmatpush.msra.mxu0 %v788
        %947 = vmatpush.msra.mxu0 %v787
        %948 = vmatpush.msra.mxu0 %v786
        %949 = vmatpush.msra.mxu0 %v785
        %950 = vmatpush.msra.mxu0 %v784
        %951 = vmatpush.msra.mxu0 %v783
        %952 = vmatpush.msra.mxu0 %v782
        %953 = vmatmul.f32.gmra.mxu0 %v832
        %v954 = vpop.f32.mrf.mxu0
        %v955 = vadd.f32 0.0, %v954
        %956 = vmatmul.f32.gmra.mxu0 %v835
        %v957 = vpop.f32.mrf.mxu0
        %v958 = vadd.f32 0.0, %v957
        %959 = vmatmul.f32.gmra.mxu0 %v838
        %v960 = vpop.f32.mrf.mxu0
        %v961 = vadd.f32 0.0, %v960
        %962 = vmatmul.f32.gmra.mxu0 %v841
        %v963 = vpop.f32.mrf.mxu0
        %v964 = vadd.f32 0.0, %v963
        %965 = vmatmul.f32.gmra.mxu0 %v844
        %v966 = vpop.f32.mrf.mxu0
        %v967 = vadd.f32 0.0, %v966
        %968 = vmatmul.f32.gmra.mxu0 %v847
        %v969 = vpop.f32.mrf.mxu0
        %v970 = vadd.f32 0.0, %v969
        %971 = vmatmul.f32.gmra.mxu0 %v850
        %v972 = vpop.f32.mrf.mxu0
        %v973 = vadd.f32 0.0, %v972
        %974 = vmatmul.f32.gmra.mxu0 %v853
        %v975 = vpop.f32.mrf.mxu0
        %v976 = vadd.f32 0.0, %v975
        %977 = vdwg.mxu0
        %978 = vmatpush.msra.mxu0 0.0
        %979 = vmatpush.msra.mxu0 0.0
        %980 = vmatpush.msra.mxu0 0.0
        %981 = vmatpush.msra.mxu0 0.0
        %982 = vmatpush.msra.mxu0 0.0
        %983 = vmatpush.msra.mxu0 0.0
        %984 = vmatpush.msra.mxu0 0.0
        %985 = vmatpush.msra.mxu0 0.0
        %986 = vmatpush.msra.mxu0 %v797
        %987 = vmatpush.msra.mxu0 %v796
        %988 = vmatpush.msra.mxu0 %v795
        %989 = vmatpush.msra.mxu0 %v794
        %990 = vmatpush.msra.mxu0 %v793
        %991 = vmatpush.msra.mxu0 %v792
        %992 = vmatpush.msra.mxu0 %v791
        %993 = vmatpush.msra.mxu0 %v790
        %994 = vmatmul.f32.gmra.mxu0 %v832
        %v995 = vpop.f32.mrf.mxu0
        %v996 = vadd.f32 0.0, %v995
        %997 = vmatmul.f32.gmra.mxu0 %v835
        %v998 = vpop.f32.mrf.mxu0
        %v999 = vadd.f32 0.0, %v998
        %1000 = vmatmul.f32.gmra.mxu0 %v838
        %v1001 = vpop.f32.mrf.mxu0
        %v1002 = vadd.f32 0.0, %v1001
        %1003 = vmatmul.f32.gmra.mxu0 %v841
        %v1004 = vpop.f32.mrf.mxu0
        %v1005 = vadd.f32 0.0, %v1004
        %1006 = vmatmul.f32.gmra.mxu0 %v844
        %v1007 = vpop.f32.mrf.mxu0
        %v1008 = vadd.f32 0.0, %v1007
        %1009 = vmatmul.f32.gmra.mxu0 %v847
        %v1010 = vpop.f32.mrf.mxu0
        %v1011 = vadd.f32 0.0, %v1010
        %1012 = vmatmul.f32.gmra.mxu0 %v850
        %v1013 = vpop.f32.mrf.mxu0
        %v1014 = vadd.f32 0.0, %v1013
        %1015 = vmatmul.f32.gmra.mxu0 %v853
        %v1016 = vpop.f32.mrf.mxu0
        %v1017 = vadd.f32 0.0, %v1016
        %1018 = vdwg.mxu0
        %1019 = vmatpush.msra.mxu0 0.0
        %1020 = vmatpush.msra.mxu0 0.0
        %1021 = vmatpush.msra.mxu0 0.0
        %1022 = vmatpush.msra.mxu0 0.0
        %1023 = vmatpush.msra.mxu0 0.0
        %1024 = vmatpush.msra.mxu0 0.0
        %1025 = vmatpush.msra.mxu0 0.0
        %1026 = vmatpush.msra.mxu0 0.0
        %1027 = vmatpush.msra.mxu0 %v805
        %1028 = vmatpush.msra.mxu0 %v804
        %1029 = vmatpush.msra.mxu0 %v803
        %1030 = vmatpush.msra.mxu0 %v802
        %1031 = vmatpush.msra.mxu0 %v801
        %1032 = vmatpush.msra.mxu0 %v800
        %1033 = vmatpush.msra.mxu0 %v799
        %1034 = vmatpush.msra.mxu0 %v798
        %1035 = vmatmul.f32.gmra.mxu0 %v832
        %v1036 = vpop.f32.mrf.mxu0
        %v1037 = vadd.f32 0.0, %v1036
        %1038 = vmatmul.f32.gmra.mxu0 %v835
        %v1039 = vpop.f32.mrf.mxu0
        %v1040 = vadd.f32 0.0, %v1039
        %1041 = vmatmul.f32.gmra.mxu0 %v838
        %v1042 = vpop.f32.mrf.mxu0
        %v1043 = vadd.f32 0.0, %v1042
        %1044 = vmatmul.f32.gmra.mxu0 %v841
        %v1045 = vpop.f32.mrf.mxu0
        %v1046 = vadd.f32 0.0, %v1045
        %1047 = vmatmul.f32.gmra.mxu0 %v844
        %v1048 = vpop.f32.mrf.mxu0
        %v1049 = vadd.f32 0.0, %v1048
        %1050 = vmatmul.f32.gmra.mxu0 %v847
        %v1051 = vpop.f32.mrf.mxu0
        %v1052 = vadd.f32 0.0, %v1051
        %1053 = vmatmul.f32.gmra.mxu0 %v850
        %v1054 = vpop.f32.mrf.mxu0
        %v1055 = vadd.f32 0.0, %v1054
        %1056 = vmatmul.f32.gmra.mxu0 %v853
        %v1057 = vpop.f32.mrf.mxu0
        %v1058 = vadd.f32 0.0, %v1057
        %1059 = vdwg.mxu0
        %1060 = vmatpush.msra.mxu0 0.0
        %1061 = vmatpush.msra.mxu0 0.0
        %1062 = vmatpush.msra.mxu0 0.0
        %1063 = vmatpush.msra.mxu0 0.0
        %1064 = vmatpush.msra.mxu0 0.0
        %1065 = vmatpush.msra.mxu0 0.0
        %1066 = vmatpush.msra.mxu0 0.0
        %1067 = vmatpush.msra.mxu0 0.0
        %1068 = vmatpush.msra.mxu0 %v813
        %1069 = vmatpush.msra.mxu0 %v812
        %1070 = vmatpush.msra.mxu0 %v811
        %1071 = vmatpush.msra.mxu0 %v810
        %1072 = vmatpush.msra.mxu0 %v809
        %1073 = vmatpush.msra.mxu0 %v808
        %1074 = vmatpush.msra.mxu0 %v807
        %1075 = vmatpush.msra.mxu0 %v806
        %1076 = vmatmul.f32.gmra.mxu0 %v832
        %v1077 = vpop.f32.mrf.mxu0
        %v1078 = vadd.f32 0.0, %v1077
        %1079 = vmatmul.f32.gmra.mxu0 %v835
        %v1080 = vpop.f32.mrf.mxu0
        %v1081 = vadd.f32 0.0, %v1080
        %1082 = vmatmul.f32.gmra.mxu0 %v838
        %v1083 = vpop.f32.mrf.mxu0
        %v1084 = vadd.f32 0.0, %v1083
        %1085 = vmatmul.f32.gmra.mxu0 %v841
        %v1086 = vpop.f32.mrf.mxu0
        %v1087 = vadd.f32 0.0, %v1086
        %1088 = vmatmul.f32.gmra.mxu0 %v844
        %v1089 = vpop.f32.mrf.mxu0
        %v1090 = vadd.f32 0.0, %v1089
        %1091 = vmatmul.f32.gmra.mxu0 %v847
        %v1092 = vpop.f32.mrf.mxu0
        %v1093 = vadd.f32 0.0, %v1092
        %1094 = vmatmul.f32.gmra.mxu0 %v850
        %v1095 = vpop.f32.mrf.mxu0
        %v1096 = vadd.f32 0.0, %v1095
        %1097 = vmatmul.f32.gmra.mxu0 %v853
        %v1098 = vpop.f32.mrf.mxu0
        %v1099 = vadd.f32 0.0, %v1098
        %1100 = vdwg.mxu0
        %1101 = vmatpush.msra.mxu0 0.0
        %1102 = vmatpush.msra.mxu0 0.0
        %1103 = vmatpush.msra.mxu0 0.0
        %1104 = vmatpush.msra.mxu0 0.0
        %1105 = vmatpush.msra.mxu0 0.0
        %1106 = vmatpush.msra.mxu0 0.0
        %1107 = vmatpush.msra.mxu0 0.0
        %1108 = vmatpush.msra.mxu0 0.0
        %1109 = vmatpush.msra.mxu0 %v821
        %1110 = vmatpush.msra.mxu0 %v820
        %1111 = vmatpush.msra.mxu0 %v819
        %1112 = vmatpush.msra.mxu0 %v818
        %1113 = vmatpush.msra.mxu0 %v817
        %1114 = vmatpush.msra.mxu0 %v816
        %1115 = vmatpush.msra.mxu0 %v815
        %1116 = vmatpush.msra.mxu0 %v814
        %1117 = vmatmul.f32.gmra.mxu0 %v832
        %v1118 = vpop.f32.mrf.mxu0
        %v1119 = vadd.f32 0.0, %v1118
        %1120 = vmatmul.f32.gmra.mxu0 %v835
        %v1121 = vpop.f32.mrf.mxu0
        %v1122 = vadd.f32 0.0, %v1121
        %1123 = vmatmul.f32.gmra.mxu0 %v838
        %v1124 = vpop.f32.mrf.mxu0
        %v1125 = vadd.f32 0.0, %v1124
        %1126 = vmatmul.f32.gmra.mxu0 %v841
        %v1127 = vpop.f32.mrf.mxu0
        %v1128 = vadd.f32 0.0, %v1127
        %1129 = vmatmul.f32.gmra.mxu0 %v844
        %v1130 = vpop.f32.mrf.mxu0
        %v1131 = vadd.f32 0.0, %v1130
        %1132 = vmatmul.f32.gmra.mxu0 %v847
        %v1133 = vpop.f32.mrf.mxu0
        %v1134 = vadd.f32 0.0, %v1133
        %1135 = vmatmul.f32.gmra.mxu0 %v850
        %v1136 = vpop.f32.mrf.mxu0
        %v1137 = vadd.f32 0.0, %v1136
        %1138 = vmatmul.f32.gmra.mxu0 %v853
        %v1139 = vpop.f32.mrf.mxu0
        %v1140 = vadd.f32 0.0, %v1139
        %1141 = vdwg.mxu0
        %1142 = vmatpush.msra.mxu0 0.0
        %1143 = vmatpush.msra.mxu0 0.0
        %1144 = vmatpush.msra.mxu0 0.0
        %1145 = vmatpush.msra.mxu0 0.0
        %1146 = vmatpush.msra.mxu0 0.0
        %1147 = vmatpush.msra.mxu0 0.0
        %1148 = vmatpush.msra.mxu0 0.0
        %1149 = vmatpush.msra.mxu0 0.0
        %1150 = vmatpush.msra.mxu0 %v829
        %1151 = vmatpush.msra.mxu0 %v828
        %1152 = vmatpush.msra.mxu0 %v827
        %1153 = vmatpush.msra.mxu0 %v826
        %1154 = vmatpush.msra.mxu0 %v825
        %1155 = vmatpush.msra.mxu0 %v824
        %1156 = vmatpush.msra.mxu0 %v823
        %1157 = vmatpush.msra.mxu0 %v822
        %1158 = vmatmul.f32.gmra.mxu0 %v832
        %v1159 = vpop.f32.mrf.mxu0
        %v1160 = vadd.f32 0.0, %v1159
        %1161 = vmatmul.f32.gmra.mxu0 %v835
        %v1162 = vpop.f32.mrf.mxu0
        %v1163 = vadd.f32 0.0, %v1162
        %1164 = vmatmul.f32.gmra.mxu0 %v838
        %v1165 = vpop.f32.mrf.mxu0
        %v1166 = vadd.f32 0.0, %v1165
        %1167 = vmatmul.f32.gmra.mxu0 %v841
        %v1168 = vpop.f32.mrf.mxu0
        %v1169 = vadd.f32 0.0, %v1168
        %1170 = vmatmul.f32.gmra.mxu0 %v844
        %v1171 = vpop.f32.mrf.mxu0
        %v1172 = vadd.f32 0.0, %v1171
        %1173 = vmatmul.f32.gmra.mxu0 %v847
        %v1174 = vpop.f32.mrf.mxu0
        %v1175 = vadd.f32 0.0, %v1174
        %1176 = vmatmul.f32.gmra.mxu0 %v850
        %v1177 = vpop.f32.mrf.mxu0
        %v1178 = vadd.f32 0.0, %v1177
        %1179 = vmatmul.f32.gmra.mxu0 %v853
        %v1180 = vpop.f32.mrf.mxu0
        %v1181 = vadd.f32 0.0, %v1180
        %1182 = vdwg.mxu0
        %1183 = vadd.xlane.f32.xlu0 %v873
        %v1184 = vpop.xlane.xlu0 %1183
        %1185 = vadd.xlane.f32.xlu0 %v876
        %v1186 = vpop.xlane.xlu0 %1185
        %1187 = vadd.xlane.f32.xlu0 %v879
        %v1188 = vpop.xlane.xlu0 %1187
        %1189 = vadd.xlane.f32.xlu0 %v882
        %v1190 = vpop.xlane.xlu0 %1189
        %1191 = vadd.xlane.f32.xlu0 %v885
        %v1192 = vpop.xlane.xlu0 %1191
        %1193 = vadd.xlane.f32.xlu0 %v888
        %v1194 = vpop.xlane.xlu0 %1193
        %1195 = vadd.xlane.f32.xlu0 %v891
        %v1196 = vpop.xlane.xlu0 %1195
        %1197 = vadd.xlane.f32.xlu0 %v894
        %v1198 = vpop.xlane.xlu0 %1197
        %1199 = vadd.xlane.f32.xlu0 %v914
        %v1200 = vpop.xlane.xlu0 %1199
        %1201 = vadd.xlane.f32.xlu0 %v917
        %v1202 = vpop.xlane.xlu0 %1201
        %1203 = vadd.xlane.f32.xlu0 %v920
        %v1204 = vpop.xlane.xlu0 %1203
        %1205 = vadd.xlane.f32.xlu0 %v923
        %v1206 = vpop.xlane.xlu0 %1205
        %1207 = vadd.xlane.f32.xlu0 %v926
        %v1208 = vpop.xlane.xlu0 %1207
        %1209 = vadd.xlane.f32.xlu0 %v929
        %v1210 = vpop.xlane.xlu0 %1209
        %1211 = vadd.xlane.f32.xlu0 %v932
        %v1212 = vpop.xlane.xlu0 %1211
        %1213 = vadd.xlane.f32.xlu0 %v935
        %v1214 = vpop.xlane.xlu0 %1213
        %1215 = vadd.xlane.f32.xlu0 %v955
        %v1216 = vpop.xlane.xlu0 %1215
        %1217 = vadd.xlane.f32.xlu0 %v958
        %v1218 = vpop.xlane.xlu0 %1217
        %1219 = vadd.xlane.f32.xlu0 %v961
        %v1220 = vpop.xlane.xlu0 %1219
        %1221 = vadd.xlane.f32.xlu0 %v964
        %v1222 = vpop.xlane.xlu0 %1221
        %1223 = vadd.xlane.f32.xlu0 %v967
        %v1224 = vpop.xlane.xlu0 %1223
        %1225 = vadd.xlane.f32.xlu0 %v970
        %v1226 = vpop.xlane.xlu0 %1225
        %1227 = vadd.xlane.f32.xlu0 %v973
        %v1228 = vpop.xlane.xlu0 %1227
        %1229 = vadd.xlane.f32.xlu0 %v976
        %v1230 = vpop.xlane.xlu0 %1229
        %1231 = vadd.xlane.f32.xlu0 %v996
        %v1232 = vpop.xlane.xlu0 %1231
        %1233 = vadd.xlane.f32.xlu0 %v999
        %v1234 = vpop.xlane.xlu0 %1233
        %1235 = vadd.xlane.f32.xlu0 %v1002
        %v1236 = vpop.xlane.xlu0 %1235
        %1237 = vadd.xlane.f32.xlu0 %v1005
        %v1238 = vpop.xlane.xlu0 %1237
        %1239 = vadd.xlane.f32.xlu0 %v1008
        %v1240 = vpop.xlane.xlu0 %1239
        %1241 = vadd.xlane.f32.xlu0 %v1011
        %v1242 = vpop.xlane.xlu0 %1241
        %1243 = vadd.xlane.f32.xlu0 %v1014
        %v1244 = vpop.xlane.xlu0 %1243
        %1245 = vadd.xlane.f32.xlu0 %v1017
        %v1246 = vpop.xlane.xlu0 %1245
        %1247 = vadd.xlane.f32.xlu0 %v1037
        %v1248 = vpop.xlane.xlu0 %1247
        %1249 = vadd.xlane.f32.xlu0 %v1040
        %v1250 = vpop.xlane.xlu0 %1249
        %1251 = vadd.xlane.f32.xlu0 %v1043
        %v1252 = vpop.xlane.xlu0 %1251
        %1253 = vadd.xlane.f32.xlu0 %v1046
        %v1254 = vpop.xlane.xlu0 %1253
        %1255 = vadd.xlane.f32.xlu0 %v1049
        %v1256 = vpop.xlane.xlu0 %1255
        %1257 = vadd.xlane.f32.xlu0 %v1052
        %v1258 = vpop.xlane.xlu0 %1257
        %1259 = vadd.xlane.f32.xlu0 %v1055
        %v1260 = vpop.xlane.xlu0 %1259
        %1261 = vadd.xlane.f32.xlu0 %v1058
        %v1262 = vpop.xlane.xlu0 %1261
        %1263 = vadd.xlane.f32.xlu0 %v1078
        %v1264 = vpop.xlane.xlu0 %1263
        %1265 = vadd.xlane.f32.xlu0 %v1081
        %v1266 = vpop.xlane.xlu0 %1265
        %1267 = vadd.xlane.f32.xlu0 %v1084
        %v1268 = vpop.xlane.xlu0 %1267
        %1269 = vadd.xlane.f32.xlu0 %v1087
        %v1270 = vpop.xlane.xlu0 %1269
        %1271 = vadd.xlane.f32.xlu0 %v1090
        %v1272 = vpop.xlane.xlu0 %1271
        %1273 = vadd.xlane.f32.xlu0 %v1093
        %v1274 = vpop.xlane.xlu0 %1273
        %1275 = vadd.xlane.f32.xlu0 %v1096
        %v1276 = vpop.xlane.xlu0 %1275
        %1277 = vadd.xlane.f32.xlu0 %v1099
        %v1278 = vpop.xlane.xlu0 %1277
        %1279 = vadd.xlane.f32.xlu0 %v1119
        %v1280 = vpop.xlane.xlu0 %1279
        %1281 = vadd.xlane.f32.xlu0 %v1122
        %v1282 = vpop.xlane.xlu0 %1281
        %1283 = vadd.xlane.f32.xlu0 %v1125
        %v1284 = vpop.xlane.xlu0 %1283
        %1285 = vadd.xlane.f32.xlu0 %v1128
        %v1286 = vpop.xlane.xlu0 %1285
        %1287 = vadd.xlane.f32.xlu0 %v1131
        %v1288 = vpop.xlane.xlu0 %1287
        %1289 = vadd.xlane.f32.xlu0 %v1134
        %v1290 = vpop.xlane.xlu0 %1289
        %1291 = vadd.xlane.f32.xlu0 %v1137
        %v1292 = vpop.xlane.xlu0 %1291
        %1293 = vadd.xlane.f32.xlu0 %v1140
        %v1294 = vpop.xlane.xlu0 %1293
        %1295 = vadd.xlane.f32.xlu0 %v1160
        %v1296 = vpop.xlane.xlu0 %1295
        %1297 = vadd.xlane.f32.xlu0 %v1163
        %v1298 = vpop.xlane.xlu0 %1297
        %1299 = vadd.xlane.f32.xlu0 %v1166
        %v1300 = vpop.xlane.xlu0 %1299
        %1301 = vadd.xlane.f32.xlu0 %v1169
        %v1302 = vpop.xlane.xlu0 %1301
        %1303 = vadd.xlane.f32.xlu0 %v1172
        %v1304 = vpop.xlane.xlu0 %1303
        %1305 = vadd.xlane.f32.xlu0 %v1175
        %v1306 = vpop.xlane.xlu0 %1305
        %1307 = vadd.xlane.f32.xlu0 %v1178
        %v1308 = vpop.xlane.xlu0 %1307
        %1309 = vadd.xlane.f32.xlu0 %v1181
        %v1310 = vpop.xlane.xlu0 %1309
        %v1311 = vadd.f32 %v1184, %v1200
        %v1312 = vadd.f32 %v1311, %v1216
        %v1313 = vadd.f32 %v1312, %v1232
        %v1314 = vadd.f32 %v1313, %v1248
        %v1315 = vadd.f32 %v1314, %v1264
        %v1316 = vadd.f32 %v1315, %v1280
        %v1317 = vadd.f32 %v1316, %v1296
        %v1318 = vadd.f32 %v1186, %v1202
        %v1319 = vadd.f32 %v1318, %v1218
        %v1320 = vadd.f32 %v1319, %v1234
        %v1321 = vadd.f32 %v1320, %v1250
        %v1322 = vadd.f32 %v1321, %v1266
        %v1323 = vadd.f32 %v1322, %v1282
        %v1324 = vadd.f32 %v1323, %v1298
        %v1325 = vadd.f32 %v1188, %v1204
        %v1326 = vadd.f32 %v1325, %v1220
        %v1327 = vadd.f32 %v1326, %v1236
        %v1328 = vadd.f32 %v1327, %v1252
        %v1329 = vadd.f32 %v1328, %v1268
        %v1330 = vadd.f32 %v1329, %v1284
        %v1331 = vadd.f32 %v1330, %v1300
        %v1332 = vadd.f32 %v1190, %v1206
        %v1333 = vadd.f32 %v1332, %v1222
        %v1334 = vadd.f32 %v1333, %v1238
        %v1335 = vadd.f32 %v1334, %v1254
        %v1336 = vadd.f32 %v1335, %v1270
        %v1337 = vadd.f32 %v1336, %v1286
        %v1338 = vadd.f32 %v1337, %v1302
        %v1339 = vadd.f32 %v1192, %v1208
        %v1340 = vadd.f32 %v1339, %v1224
        %v1341 = vadd.f32 %v1340, %v1240
        %v1342 = vadd.f32 %v1341, %v1256
        %v1343 = vadd.f32 %v1342, %v1272
        %v1344 = vadd.f32 %v1343, %v1288
        %v1345 = vadd.f32 %v1344, %v1304
        %v1346 = vadd.f32 %v1194, %v1210
        %v1347 = vadd.f32 %v1346, %v1226
        %v1348 = vadd.f32 %v1347, %v1242
        %v1349 = vadd.f32 %v1348, %v1258
        %v1350 = vadd.f32 %v1349, %v1274
        %v1351 = vadd.f32 %v1350, %v1290
        %v1352 = vadd.f32 %v1351, %v1306
        %v1353 = vadd.f32 %v1196, %v1212
        %v1354 = vadd.f32 %v1353, %v1228
        %v1355 = vadd.f32 %v1354, %v1244
        %v1356 = vadd.f32 %v1355, %v1260
        %v1357 = vadd.f32 %v1356, %v1276
        %v1358 = vadd.f32 %v1357, %v1292
        %v1359 = vadd.f32 %v1358, %v1308
        %v1360 = vadd.f32 %v1198, %v1214
        %v1361 = vadd.f32 %v1360, %v1230
        %v1362 = vadd.f32 %v1361, %v1246
        %v1363 = vadd.f32 %v1362, %v1262
        %v1364 = vadd.f32 %v1363, %v1278
        %v1365 = vadd.f32 %v1364, %v1294
        %v1366 = vadd.f32 %v1365, %v1310
        %v1367 = vmul.f32 %v873, %v873
        %v1368 = vmul.f32 %v876, %v876
        %v1369 = vmul.f32 %v879, %v879
        %v1370 = vmul.f32 %v882, %v882
        %v1371 = vmul.f32 %v885, %v885
        %v1372 = vmul.f32 %v888, %v888
        %v1373 = vmul.f32 %v891, %v891
        %v1374 = vmul.f32 %v894, %v894
        %v1375 = vmul.f32 %v914, %v914
        %v1376 = vmul.f32 %v917, %v917
        %v1377 = vmul.f32 %v920, %v920
        %v1378 = vmul.f32 %v923, %v923
        %v1379 = vmul.f32 %v926, %v926
        %v1380 = vmul.f32 %v929, %v929
        %v1381 = vmul.f32 %v932, %v932
        %v1382 = vmul.f32 %v935, %v935
        %v1383 = vmul.f32 %v955, %v955
        %v1384 = vmul.f32 %v958, %v958
        %v1385 = vmul.f32 %v961, %v961
        %v1386 = vmul.f32 %v964, %v964
        %v1387 = vmul.f32 %v967, %v967
        %v1388 = vmul.f32 %v970, %v970
        %v1389 = vmul.f32 %v973, %v973
        %v1390 = vmul.f32 %v976, %v976
        %v1391 = vmul.f32 %v996, %v996
        %v1392 = vmul.f32 %v999, %v999
        %v1393 = vmul.f32 %v1002, %v1002
        %v1394 = vmul.f32 %v1005, %v1005
        %v1395 = vmul.f32 %v1008, %v1008
        %v1396 = vmul.f32 %v1011, %v1011
        %v1397 = vmul.f32 %v1014, %v1014
        %v1398 = vmul.f32 %v1017, %v1017
        %v1399 = vmul.f32 %v1037, %v1037
        %v1400 = vmul.f32 %v1040, %v1040
        %v1401 = vmul.f32 %v1043, %v1043
        %v1402 = vmul.f32 %v1046, %v1046
        %v1403 = vmul.f32 %v1049, %v1049
        %v1404 = vmul.f32 %v1052, %v1052
        %v1405 = vmul.f32 %v1055, %v1055
        %v1406 = vmul.f32 %v1058, %v1058
        %v1407 = vmul.f32 %v1078, %v1078
        %v1408 = vmul.f32 %v1081, %v1081
        %v1409 = vmul.f32 %v1084, %v1084
        %v1410 = vmul.f32 %v1087, %v1087
        %v1411 = vmul.f32 %v1090, %v1090
        %v1412 = vmul.f32 %v1093, %v1093
        %v1413 = vmul.f32 %v1096, %v1096
        %v1414 = vmul.f32 %v1099, %v1099
        %v1415 = vmul.f32 %v1119, %v1119
        %v1416 = vmul.f32 %v1122, %v1122
        %v1417 = vmul.f32 %v1125, %v1125
        %v1418 = vmul.f32 %v1128, %v1128
        %v1419 = vmul.f32 %v1131, %v1131
        %v1420 = vmul.f32 %v1134, %v1134
        %v1421 = vmul.f32 %v1137, %v1137
        %v1422 = vmul.f32 %v1140, %v1140
        %v1423 = vmul.f32 %v1160, %v1160
        %v1424 = vmul.f32 %v1163, %v1163
        %v1425 = vmul.f32 %v1166, %v1166
        %v1426 = vmul.f32 %v1169, %v1169
        %v1427 = vmul.f32 %v1172, %v1172
        %v1428 = vmul.f32 %v1175, %v1175
        %v1429 = vmul.f32 %v1178, %v1178
        %v1430 = vmul.f32 %v1181, %v1181
        %1431 = vadd.xlane.f32.xlu0 %v1367
        %v1432 = vpop.xlane.xlu0 %1431
        %1433 = vadd.xlane.f32.xlu0 %v1368
        %v1434 = vpop.xlane.xlu0 %1433
        %1435 = vadd.xlane.f32.xlu0 %v1369
        %v1436 = vpop.xlane.xlu0 %1435
        %1437 = vadd.xlane.f32.xlu0 %v1370
        %v1438 = vpop.xlane.xlu0 %1437
        %1439 = vadd.xlane.f32.xlu0 %v1371
        %v1440 = vpop.xlane.xlu0 %1439
        %1441 = vadd.xlane.f32.xlu0 %v1372
        %v1442 = vpop.xlane.xlu0 %1441
        %1443 = vadd.xlane.f32.xlu0 %v1373
        %v1444 = vpop.xlane.xlu0 %1443
        %1445 = vadd.xlane.f32.xlu0 %v1374
        %v1446 = vpop.xlane.xlu0 %1445
        %1447 = vadd.xlane.f32.xlu0 %v1375
        %v1448 = vpop.xlane.xlu0 %1447
        %1449 = vadd.xlane.f32.xlu0 %v1376
        %v1450 = vpop.xlane.xlu0 %1449
        %1451 = vadd.xlane.f32.xlu0 %v1377
        %v1452 = vpop.xlane.xlu0 %1451
        %1453 = vadd.xlane.f32.xlu0 %v1378
        %v1454 = vpop.xlane.xlu0 %1453
        %1455 = vadd.xlane.f32.xlu0 %v1379
        %v1456 = vpop.xlane.xlu0 %1455
        %1457 = vadd.xlane.f32.xlu0 %v1380
        %v1458 = vpop.xlane.xlu0 %1457
        %1459 = vadd.xlane.f32.xlu0 %v1381
        %v1460 = vpop.xlane.xlu0 %1459
        %1461 = vadd.xlane.f32.xlu0 %v1382
        %v1462 = vpop.xlane.xlu0 %1461
        %1463 = vadd.xlane.f32.xlu0 %v1383
        %v1464 = vpop.xlane.xlu0 %1463
        %1465 = vadd.xlane.f32.xlu0 %v1384
        %v1466 = vpop.xlane.xlu0 %1465
        %1467 = vadd.xlane.f32.xlu0 %v1385
        %v1468 = vpop.xlane.xlu0 %1467
        %1469 = vadd.xlane.f32.xlu0 %v1386
        %v1470 = vpop.xlane.xlu0 %1469
        %1471 = vadd.xlane.f32.xlu0 %v1387
        %v1472 = vpop.xlane.xlu0 %1471
        %1473 = vadd.xlane.f32.xlu0 %v1388
        %v1474 = vpop.xlane.xlu0 %1473
        %1475 = vadd.xlane.f32.xlu0 %v1389
        %v1476 = vpop.xlane.xlu0 %1475
        %1477 = vadd.xlane.f32.xlu0 %v1390
        %v1478 = vpop.xlane.xlu0 %1477
        %1479 = vadd.xlane.f32.xlu0 %v1391
        %v1480 = vpop.xlane.xlu0 %1479
        %1481 = vadd.xlane.f32.xlu0 %v1392
        %v1482 = vpop.xlane.xlu0 %1481
        %1483 = vadd.xlane.f32.xlu0 %v1393
        %v1484 = vpop.xlane.xlu0 %1483
        %1485 = vadd.xlane.f32.xlu0 %v1394
        %v1486 = vpop.xlane.xlu0 %1485
        %1487 = vadd.xlane.f32.xlu0 %v1395
        %v1488 = vpop.xlane.xlu0 %1487
        %1489 = vadd.xlane.f32.xlu0 %v1396
        %v1490 = vpop.xlane.xlu0 %1489
        %1491 = vadd.xlane.f32.xlu0 %v1397
        %v1492 = vpop.xlane.xlu0 %1491
        %1493 = vadd.xlane.f32.xlu0 %v1398
        %v1494 = vpop.xlane.xlu0 %1493
        %1495 = vadd.xlane.f32.xlu0 %v1399
        %v1496 = vpop.xlane.xlu0 %1495
        %1497 = vadd.xlane.f32.xlu0 %v1400
        %v1498 = vpop.xlane.xlu0 %1497
        %1499 = vadd.xlane.f32.xlu0 %v1401
        %v1500 = vpop.xlane.xlu0 %1499
        %1501 = vadd.xlane.f32.xlu0 %v1402
        %v1502 = vpop.xlane.xlu0 %1501
        %1503 = vadd.xlane.f32.xlu0 %v1403
        %v1504 = vpop.xlane.xlu0 %1503
        %1505 = vadd.xlane.f32.xlu0 %v1404
        %v1506 = vpop.xlane.xlu0 %1505
        %1507 = vadd.xlane.f32.xlu0 %v1405
        %v1508 = vpop.xlane.xlu0 %1507
        %1509 = vadd.xlane.f32.xlu0 %v1406
        %v1510 = vpop.xlane.xlu0 %1509
        %1511 = vadd.xlane.f32.xlu0 %v1407
        %v1512 = vpop.xlane.xlu0 %1511
        %1513 = vadd.xlane.f32.xlu0 %v1408
        %v1514 = vpop.xlane.xlu0 %1513
        %1515 = vadd.xlane.f32.xlu0 %v1409
        %v1516 = vpop.xlane.xlu0 %1515
        %1517 = vadd.xlane.f32.xlu0 %v1410
        %v1518 = vpop.xlane.xlu0 %1517
        %1519 = vadd.xlane.f32.xlu0 %v1411
        %v1520 = vpop.xlane.xlu0 %1519
        %1521 = vadd.xlane.f32.xlu0 %v1412
        %v1522 = vpop.xlane.xlu0 %1521
        %1523 = vadd.xlane.f32.xlu0 %v1413
        %v1524 = vpop.xlane.xlu0 %1523
        %1525 = vadd.xlane.f32.xlu0 %v1414
        %v1526 = vpop.xlane.xlu0 %1525
        %1527 = vadd.xlane.f32.xlu0 %v1415
        %v1528 = vpop.xlane.xlu0 %1527
        %1529 = vadd.xlane.f32.xlu0 %v1416
        %v1530 = vpop.xlane.xlu0 %1529
        %1531 = vadd.xlane.f32.xlu0 %v1417
        %v1532 = vpop.xlane.xlu0 %1531
        %1533 = vadd.xlane.f32.xlu0 %v1418
        %v1534 = vpop.xlane.xlu0 %1533
        %1535 = vadd.xlane.f32.xlu0 %v1419
        %v1536 = vpop.xlane.xlu0 %1535
        %1537 = vadd.xlane.f32.xlu0 %v1420
        %v1538 = vpop.xlane.xlu0 %1537
        %1539 = vadd.xlane.f32.xlu0 %v1421
        %v1540 = vpop.xlane.xlu0 %1539
        %1541 = vadd.xlane.f32.xlu0 %v1422
        %v1542 = vpop.xlane.xlu0 %1541
        %1543 = vadd.xlane.f32.xlu0 %v1423
        %v1544 = vpop.xlane.xlu0 %1543
        %1545 = vadd.xlane.f32.xlu0 %v1424
        %v1546 = vpop.xlane.xlu0 %1545
        %1547 = vadd.xlane.f32.xlu0 %v1425
        %v1548 = vpop.xlane.xlu0 %1547
        %1549 = vadd.xlane.f32.xlu0 %v1426
        %v1550 = vpop.xlane.xlu0 %1549
        %1551 = vadd.xlane.f32.xlu0 %v1427
        %v1552 = vpop.xlane.xlu0 %1551
        %1553 = vadd.xlane.f32.xlu0 %v1428
        %v1554 = vpop.xlane.xlu0 %1553
        %1555 = vadd.xlane.f32.xlu0 %v1429
        %v1556 = vpop.xlane.xlu0 %1555
        %1557 = vadd.xlane.f32.xlu0 %v1430
        %v1558 = vpop.xlane.xlu0 %1557
        %v1559 = vadd.f32 %v1432, %v1448
        %v1560 = vadd.f32 %v1559, %v1464
        %v1561 = vadd.f32 %v1560, %v1480
        %v1562 = vadd.f32 %v1561, %v1496
        %v1563 = vadd.f32 %v1562, %v1512
        %v1564 = vadd.f32 %v1563, %v1528
        %v1565 = vadd.f32 %v1564, %v1544
        %v1566 = vadd.f32 %v1434, %v1450
        %v1567 = vadd.f32 %v1566, %v1466
        %v1568 = vadd.f32 %v1567, %v1482
        %v1569 = vadd.f32 %v1568, %v1498
        %v1570 = vadd.f32 %v1569, %v1514
        %v1571 = vadd.f32 %v1570, %v1530
        %v1572 = vadd.f32 %v1571, %v1546
        %v1573 = vadd.f32 %v1436, %v1452
        %v1574 = vadd.f32 %v1573, %v1468
        %v1575 = vadd.f32 %v1574, %v1484
        %v1576 = vadd.f32 %v1575, %v1500
        %v1577 = vadd.f32 %v1576, %v1516
        %v1578 = vadd.f32 %v1577, %v1532
        %v1579 = vadd.f32 %v1578, %v1548
        %v1580 = vadd.f32 %v1438, %v1454
        %v1581 = vadd.f32 %v1580, %v1470
        %v1582 = vadd.f32 %v1581, %v1486
        %v1583 = vadd.f32 %v1582, %v1502
        %v1584 = vadd.f32 %v1583, %v1518
        %v1585 = vadd.f32 %v1584, %v1534
        %v1586 = vadd.f32 %v1585, %v1550
        %v1587 = vadd.f32 %v1440, %v1456
        %v1588 = vadd.f32 %v1587, %v1472
        %v1589 = vadd.f32 %v1588, %v1488
        %v1590 = vadd.f32 %v1589, %v1504
        %v1591 = vadd.f32 %v1590, %v1520
        %v1592 = vadd.f32 %v1591, %v1536
        %v1593 = vadd.f32 %v1592, %v1552
        %v1594 = vadd.f32 %v1442, %v1458
        %v1595 = vadd.f32 %v1594, %v1474
        %v1596 = vadd.f32 %v1595, %v1490
        %v1597 = vadd.f32 %v1596, %v1506
        %v1598 = vadd.f32 %v1597, %v1522
        %v1599 = vadd.f32 %v1598, %v1538
        %v1600 = vadd.f32 %v1599, %v1554
        %v1601 = vadd.f32 %v1444, %v1460
        %v1602 = vadd.f32 %v1601, %v1476
        %v1603 = vadd.f32 %v1602, %v1492
        %v1604 = vadd.f32 %v1603, %v1508
        %v1605 = vadd.f32 %v1604, %v1524
        %v1606 = vadd.f32 %v1605, %v1540
        %v1607 = vadd.f32 %v1606, %v1556
        %v1608 = vadd.f32 %v1446, %v1462
        %v1609 = vadd.f32 %v1608, %v1478
        %v1610 = vadd.f32 %v1609, %v1494
        %v1611 = vadd.f32 %v1610, %v1510
        %v1612 = vadd.f32 %v1611, %v1526
        %v1613 = vadd.f32 %v1612, %v1542
        %v1614 = vadd.f32 %v1613, %v1558
        %v1615 = vmul.f32 %v1317, 0.0009765625
        %v1616 = vmul.f32 %v1324, 0.0009765625
        %v1617 = vmul.f32 %v1331, 0.0009765625
        %v1618 = vmul.f32 %v1338, 0.0009765625
        %v1619 = vmul.f32 %v1345, 0.0009765625
        %v1620 = vmul.f32 %v1352, 0.0009765625
        %v1621 = vmul.f32 %v1359, 0.0009765625
        %v1622 = vmul.f32 %v1366, 0.0009765625
        %v1623 = vmul.f32 %v1565, 0.0009765625
        %v1624 = vmul.f32 %v1572, 0.0009765625
        %v1625 = vmul.f32 %v1579, 0.0009765625
        %v1626 = vmul.f32 %v1586, 0.0009765625
        %v1627 = vmul.f32 %v1593, 0.0009765625
        %v1628 = vmul.f32 %v1600, 0.0009765625
        %v1629 = vmul.f32 %v1607, 0.0009765625
        %v1630 = vmul.f32 %v1614, 0.0009765625
        %v1631 = vmul.f32 %v1615, %v1615
        %v1632 = vmul.f32 %v1616, %v1616
        %v1633 = vmul.f32 %v1617, %v1617
        %v1634 = vmul.f32 %v1618, %v1618
        %v1635 = vmul.f32 %v1619, %v1619
        %v1636 = vmul.f32 %v1620, %v1620
        %v1637 = vmul.f32 %v1621, %v1621
        %v1638 = vmul.f32 %v1622, %v1622
        %v1639 = vsub.f32 %v1623, %v1631
        %v1640 = vsub.f32 %v1624, %v1632
        %v1641 = vsub.f32 %v1625, %v1633
        %v1642 = vsub.f32 %v1626, %v1634
        %v1643 = vsub.f32 %v1627, %v1635
        %v1644 = vsub.f32 %v1628, %v1636
        %v1645 = vsub.f32 %v1629, %v1637
        %v1646 = vsub.f32 %v1630, %v1638
        %v1647 = vmax.f32 %v1639, 0.0
        %v1648 = vmax.f32 %v1640, 0.0
        %v1649 = vmax.f32 %v1641, 0.0
        %v1650 = vmax.f32 %v1642, 0.0
        %v1651 = vmax.f32 %v1643, 0.0
        %v1652 = vmax.f32 %v1644, 0.0
        %v1653 = vmax.f32 %v1645, 0.0
        %v1654 = vmax.f32 %v1646, 0.0
        %v1655 = vsub.f32 %v873, %v1615
        %v1656 = vsub.f32 %v876, %v1616
        %v1657 = vsub.f32 %v879, %v1617
        %v1658 = vsub.f32 %v882, %v1618
        %v1659 = vsub.f32 %v885, %v1619
        %v1660 = vsub.f32 %v888, %v1620
        %v1661 = vsub.f32 %v891, %v1621
        %v1662 = vsub.f32 %v894, %v1622
        %v1663 = vsub.f32 %v914, %v1615
        %v1664 = vsub.f32 %v917, %v1616
        %v1665 = vsub.f32 %v920, %v1617
        %v1666 = vsub.f32 %v923, %v1618
        %v1667 = vsub.f32 %v926, %v1619
        %v1668 = vsub.f32 %v929, %v1620
        %v1669 = vsub.f32 %v932, %v1621
        %v1670 = vsub.f32 %v935, %v1622
        %v1671 = vsub.f32 %v955, %v1615
        %v1672 = vsub.f32 %v958, %v1616
        %v1673 = vsub.f32 %v961, %v1617
        %v1674 = vsub.f32 %v964, %v1618
        %v1675 = vsub.f32 %v967, %v1619
        %v1676 = vsub.f32 %v970, %v1620
        %v1677 = vsub.f32 %v973, %v1621
        %v1678 = vsub.f32 %v976, %v1622
        %v1679 = vsub.f32 %v996, %v1615
        %v1680 = vsub.f32 %v999, %v1616
        %v1681 = vsub.f32 %v1002, %v1617
        %v1682 = vsub.f32 %v1005, %v1618
        %v1683 = vsub.f32 %v1008, %v1619
        %v1684 = vsub.f32 %v1011, %v1620
        %v1685 = vsub.f32 %v1014, %v1621
        %v1686 = vsub.f32 %v1017, %v1622
        %v1687 = vsub.f32 %v1037, %v1615
        %v1688 = vsub.f32 %v1040, %v1616
        %v1689 = vsub.f32 %v1043, %v1617
        %v1690 = vsub.f32 %v1046, %v1618
        %v1691 = vsub.f32 %v1049, %v1619
        %v1692 = vsub.f32 %v1052, %v1620
        %v1693 = vsub.f32 %v1055, %v1621
        %v1694 = vsub.f32 %v1058, %v1622
        %v1695 = vsub.f32 %v1078, %v1615
        %v1696 = vsub.f32 %v1081, %v1616
        %v1697 = vsub.f32 %v1084, %v1617
        %v1698 = vsub.f32 %v1087, %v1618
        %v1699 = vsub.f32 %v1090, %v1619
        %v1700 = vsub.f32 %v1093, %v1620
        %v1701 = vsub.f32 %v1096, %v1621
        %v1702 = vsub.f32 %v1099, %v1622
        %v1703 = vsub.f32 %v1119, %v1615
        %v1704 = vsub.f32 %v1122, %v1616
        %v1705 = vsub.f32 %v1125, %v1617
        %v1706 = vsub.f32 %v1128, %v1618
        %v1707 = vsub.f32 %v1131, %v1619
        %v1708 = vsub.f32 %v1134, %v1620
        %v1709 = vsub.f32 %v1137, %v1621
        %v1710 = vsub.f32 %v1140, %v1622
        %v1711 = vsub.f32 %v1160, %v1615
        %v1712 = vsub.f32 %v1163, %v1616
        %v1713 = vsub.f32 %v1166, %v1617
        %v1714 = vsub.f32 %v1169, %v1618
        %v1715 = vsub.f32 %v1172, %v1619
        %v1716 = vsub.f32 %v1175, %v1620
        %v1717 = vsub.f32 %v1178, %v1621
        %v1718 = vsub.f32 %v1181, %v1622
        %v1719 = vadd.f32 %v1647, 1e-05
        %v1720 = vadd.f32 %v1648, 1e-05
        %v1721 = vadd.f32 %v1649, 1e-05
        %v1722 = vadd.f32 %v1650, 1e-05
        %v1723 = vadd.f32 %v1651, 1e-05
        %v1724 = vadd.f32 %v1652, 1e-05
        %v1725 = vadd.f32 %v1653, 1e-05
        %v1726 = vadd.f32 %v1654, 1e-05
        %v1727 = vrsqrt.pop %v1719
        %v1728 = vmul.f32 %v1727, %v1719
        %v1729 = vmul.f32 %v1728, %v1727
        %v1730 = vmul.f32 0.5, %v1729
        %v1731 = vsub.f32 1.5, %v1730
        %v1732 = vmul.f32 %v1727, %v1731
        %vm1733 = vweird.f32 %v1719
        %vm1734 = vweird.f32 %v1727
        %vm1735 = vmor %vm1733, %vm1734
        %v1736 = vsel %vm1735, %v1727, %v1732
        %v1737 = vrsqrt.pop %v1720
        %v1738 = vmul.f32 %v1737, %v1720
        %v1739 = vmul.f32 %v1738, %v1737
        %v1740 = vmul.f32 0.5, %v1739
        %v1741 = vsub.f32 1.5, %v1740
        %v1742 = vmul.f32 %v1737, %v1741
        %vm1743 = vweird.f32 %v1720
        %vm1744 = vweird.f32 %v1737
        %vm1745 = vmor %vm1743, %vm1744
        %v1746 = vsel %vm1745, %v1737, %v1742
        %v1747 = vrsqrt.pop %v1721
        %v1748 = vmul.f32 %v1747, %v1721
        %v1749 = vmul.f32 %v1748, %v1747
        %v1750 = vmul.f32 0.5, %v1749
        %v1751 = vsub.f32 1.5, %v1750
        %v1752 = vmul.f32 %v1747, %v1751
        %vm1753 = vweird.f32 %v1721
        %vm1754 = vweird.f32 %v1747
        %vm1755 = vmor %vm1753, %vm1754
        %v1756 = vsel %vm1755, %v1747, %v1752
        %v1757 = vrsqrt.pop %v1722
        %v1758 = vmul.f32 %v1757, %v1722
        %v1759 = vmul.f32 %v1758, %v1757
        %v1760 = vmul.f32 0.5, %v1759
        %v1761 = vsub.f32 1.5, %v1760
        %v1762 = vmul.f32 %v1757, %v1761
        %vm1763 = vweird.f32 %v1722
        %vm1764 = vweird.f32 %v1757
        %vm1765 = vmor %vm1763, %vm1764
        %v1766 = vsel %vm1765, %v1757, %v1762
        %v1767 = vrsqrt.pop %v1723
        %v1768 = vmul.f32 %v1767, %v1723
        %v1769 = vmul.f32 %v1768, %v1767
        %v1770 = vmul.f32 0.5, %v1769
        %v1771 = vsub.f32 1.5, %v1770
        %v1772 = vmul.f32 %v1767, %v1771
        %vm1773 = vweird.f32 %v1723
        %vm1774 = vweird.f32 %v1767
        %vm1775 = vmor %vm1773, %vm1774
        %v1776 = vsel %vm1775, %v1767, %v1772
        %v1777 = vrsqrt.pop %v1724
        %v1778 = vmul.f32 %v1777, %v1724
        %v1779 = vmul.f32 %v1778, %v1777
        %v1780 = vmul.f32 0.5, %v1779
        %v1781 = vsub.f32 1.5, %v1780
        %v1782 = vmul.f32 %v1777, %v1781
        %vm1783 = vweird.f32 %v1724
        %vm1784 = vweird.f32 %v1777
        %vm1785 = vmor %vm1783, %vm1784
        %v1786 = vsel %vm1785, %v1777, %v1782
        %v1787 = vrsqrt.pop %v1725
        %v1788 = vmul.f32 %v1787, %v1725
        %v1789 = vmul.f32 %v1788, %v1787
        %v1790 = vmul.f32 0.5, %v1789
        %v1791 = vsub.f32 1.5, %v1790
        %v1792 = vmul.f32 %v1787, %v1791
        %vm1793 = vweird.f32 %v1725
        %vm1794 = vweird.f32 %v1787
        %vm1795 = vmor %vm1793, %vm1794
        %v1796 = vsel %vm1795, %v1787, %v1792
        %v1797 = vrsqrt.pop %v1726
        %v1798 = vmul.f32 %v1797, %v1726
        %v1799 = vmul.f32 %v1798, %v1797
        %v1800 = vmul.f32 0.5, %v1799
        %v1801 = vsub.f32 1.5, %v1800
        %v1802 = vmul.f32 %v1797, %v1801
        %vm1803 = vweird.f32 %v1726
        %vm1804 = vweird.f32 %v1797
        %vm1805 = vmor %vm1803, %vm1804
        %v1806 = vsel %vm1805, %v1797, %v1802
        %v1807 = vmul.f32 %v1655, %v1736
        %v1808 = vmul.f32 %v1656, %v1746
        %v1809 = vmul.f32 %v1657, %v1756
        %v1810 = vmul.f32 %v1658, %v1766
        %v1811 = vmul.f32 %v1659, %v1776
        %v1812 = vmul.f32 %v1660, %v1786
        %v1813 = vmul.f32 %v1661, %v1796
        %v1814 = vmul.f32 %v1662, %v1806
        %v1815 = vmul.f32 %v1663, %v1736
        %v1816 = vmul.f32 %v1664, %v1746
        %v1817 = vmul.f32 %v1665, %v1756
        %v1818 = vmul.f32 %v1666, %v1766
        %v1819 = vmul.f32 %v1667, %v1776
        %v1820 = vmul.f32 %v1668, %v1786
        %v1821 = vmul.f32 %v1669, %v1796
        %v1822 = vmul.f32 %v1670, %v1806
        %v1823 = vmul.f32 %v1671, %v1736
        %v1824 = vmul.f32 %v1672, %v1746
        %v1825 = vmul.f32 %v1673, %v1756
        %v1826 = vmul.f32 %v1674, %v1766
        %v1827 = vmul.f32 %v1675, %v1776
        %v1828 = vmul.f32 %v1676, %v1786
        %v1829 = vmul.f32 %v1677, %v1796
        %v1830 = vmul.f32 %v1678, %v1806
        %v1831 = vmul.f32 %v1679, %v1736
        %v1832 = vmul.f32 %v1680, %v1746
        %v1833 = vmul.f32 %v1681, %v1756
        %v1834 = vmul.f32 %v1682, %v1766
        %v1835 = vmul.f32 %v1683, %v1776
        %v1836 = vmul.f32 %v1684, %v1786
        %v1837 = vmul.f32 %v1685, %v1796
        %v1838 = vmul.f32 %v1686, %v1806
        %v1839 = vmul.f32 %v1687, %v1736
        %v1840 = vmul.f32 %v1688, %v1746
        %v1841 = vmul.f32 %v1689, %v1756
        %v1842 = vmul.f32 %v1690, %v1766
        %v1843 = vmul.f32 %v1691, %v1776
        %v1844 = vmul.f32 %v1692, %v1786
        %v1845 = vmul.f32 %v1693, %v1796
        %v1846 = vmul.f32 %v1694, %v1806
        %v1847 = vmul.f32 %v1695, %v1736
        %v1848 = vmul.f32 %v1696, %v1746
        %v1849 = vmul.f32 %v1697, %v1756
        %v1850 = vmul.f32 %v1698, %v1766
        %v1851 = vmul.f32 %v1699, %v1776
        %v1852 = vmul.f32 %v1700, %v1786
        %v1853 = vmul.f32 %v1701, %v1796
        %v1854 = vmul.f32 %v1702, %v1806
        %v1855 = vmul.f32 %v1703, %v1736
        %v1856 = vmul.f32 %v1704, %v1746
        %v1857 = vmul.f32 %v1705, %v1756
        %v1858 = vmul.f32 %v1706, %v1766
        %v1859 = vmul.f32 %v1707, %v1776
        %v1860 = vmul.f32 %v1708, %v1786
        %v1861 = vmul.f32 %v1709, %v1796
        %v1862 = vmul.f32 %v1710, %v1806
        %v1863 = vmul.f32 %v1711, %v1736
        %v1864 = vmul.f32 %v1712, %v1746
        %v1865 = vmul.f32 %v1713, %v1756
        %v1866 = vmul.f32 %v1714, %v1766
        %v1867 = vmul.f32 %v1715, %v1776
        %v1868 = vmul.f32 %v1716, %v1786
        %v1869 = vmul.f32 %v1717, %v1796
        %v1870 = vmul.f32 %v1718, %v1806
        %1871 = vset.pattern.permute.xlu0 3
        %1872 = vperm.xlu0 %1871, %v196
        %v1873 = vpop.permute.xlu0 %1872
        %1875 = vset.pattern.permute.xlu0 3
        %1876 = vperm.xlu0 %1875, %v197
        %v1877 = vpop.permute.xlu0 %1876
        %1879 = vset.pattern.permute.xlu0 3
        %1880 = vperm.xlu0 %1879, %v198
        %v1881 = vpop.permute.xlu0 %1880
        %1883 = vset.pattern.permute.xlu0 3
        %1884 = vperm.xlu0 %1883, %v199
        %v1885 = vpop.permute.xlu0 %1884
        %1887 = vset.pattern.permute.xlu0 3
        %1888 = vperm.xlu0 %1887, %v200
        %v1889 = vpop.permute.xlu0 %1888
        %1891 = vset.pattern.permute.xlu0 3
        %1892 = vperm.xlu0 %1891, %v201
        %v1893 = vpop.permute.xlu0 %1892
        %1895 = vset.pattern.permute.xlu0 3
        %1896 = vperm.xlu0 %1895, %v202
        %v1897 = vpop.permute.xlu0 %1896
        %1899 = vset.pattern.permute.xlu0 3
        %1900 = vperm.xlu0 %1899, %v203
        %v1901 = vpop.permute.xlu0 %1900
        %v1903 = vmul.f32 %v1807, %v1873
        %v1904 = vmul.f32 %v1808, %v1877
        %v1905 = vmul.f32 %v1809, %v1881
        %v1906 = vmul.f32 %v1810, %v1885
        %v1907 = vmul.f32 %v1811, %v1889
        %v1908 = vmul.f32 %v1812, %v1893
        %v1909 = vmul.f32 %v1813, %v1897
        %v1910 = vmul.f32 %v1814, %v1901
        %v1911 = vmul.f32 %v1815, %v1873
        %v1912 = vmul.f32 %v1816, %v1877
        %v1913 = vmul.f32 %v1817, %v1881
        %v1914 = vmul.f32 %v1818, %v1885
        %v1915 = vmul.f32 %v1819, %v1889
        %v1916 = vmul.f32 %v1820, %v1893
        %v1917 = vmul.f32 %v1821, %v1897
        %v1918 = vmul.f32 %v1822, %v1901
        %v1919 = vmul.f32 %v1823, %v1873
        %v1920 = vmul.f32 %v1824, %v1877
        %v1921 = vmul.f32 %v1825, %v1881
        %v1922 = vmul.f32 %v1826, %v1885
        %v1923 = vmul.f32 %v1827, %v1889
        %v1924 = vmul.f32 %v1828, %v1893
        %v1925 = vmul.f32 %v1829, %v1897
        %v1926 = vmul.f32 %v1830, %v1901
        %v1927 = vmul.f32 %v1831, %v1873
        %v1928 = vmul.f32 %v1832, %v1877
        %v1929 = vmul.f32 %v1833, %v1881
        %v1930 = vmul.f32 %v1834, %v1885
        %v1931 = vmul.f32 %v1835, %v1889
        %v1932 = vmul.f32 %v1836, %v1893
        %v1933 = vmul.f32 %v1837, %v1897
        %v1934 = vmul.f32 %v1838, %v1901
        %v1935 = vmul.f32 %v1839, %v1873
        %v1936 = vmul.f32 %v1840, %v1877
        %v1937 = vmul.f32 %v1841, %v1881
        %v1938 = vmul.f32 %v1842, %v1885
        %v1939 = vmul.f32 %v1843, %v1889
        %v1940 = vmul.f32 %v1844, %v1893
        %v1941 = vmul.f32 %v1845, %v1897
        %v1942 = vmul.f32 %v1846, %v1901
        %v1943 = vmul.f32 %v1847, %v1873
        %v1944 = vmul.f32 %v1848, %v1877
        %v1945 = vmul.f32 %v1849, %v1881
        %v1946 = vmul.f32 %v1850, %v1885
        %v1947 = vmul.f32 %v1851, %v1889
        %v1948 = vmul.f32 %v1852, %v1893
        %v1949 = vmul.f32 %v1853, %v1897
        %v1950 = vmul.f32 %v1854, %v1901
        %v1951 = vmul.f32 %v1855, %v1873
        %v1952 = vmul.f32 %v1856, %v1877
        %v1953 = vmul.f32 %v1857, %v1881
        %v1954 = vmul.f32 %v1858, %v1885
        %v1955 = vmul.f32 %v1859, %v1889
        %v1956 = vmul.f32 %v1860, %v1893
        %v1957 = vmul.f32 %v1861, %v1897
        %v1958 = vmul.f32 %v1862, %v1901
        %v1959 = vmul.f32 %v1863, %v1873
        %v1960 = vmul.f32 %v1864, %v1877
        %v1961 = vmul.f32 %v1865, %v1881
        %v1962 = vmul.f32 %v1866, %v1885
        %v1963 = vmul.f32 %v1867, %v1889
        %v1964 = vmul.f32 %v1868, %v1893
        %v1965 = vmul.f32 %v1869, %v1897
        %v1966 = vmul.f32 %v1870, %v1901
        %1967 = vset.pattern.permute.xlu0 4
        %1968 = vperm.xlu0 %1967, %v196
        %v1969 = vpop.permute.xlu0 %1968
        %1971 = vset.pattern.permute.xlu0 4
        %1972 = vperm.xlu0 %1971, %v197
        %v1973 = vpop.permute.xlu0 %1972
        %1975 = vset.pattern.permute.xlu0 4
        %1976 = vperm.xlu0 %1975, %v198
        %v1977 = vpop.permute.xlu0 %1976
        %1979 = vset.pattern.permute.xlu0 4
        %1980 = vperm.xlu0 %1979, %v199
        %v1981 = vpop.permute.xlu0 %1980
        %1983 = vset.pattern.permute.xlu0 4
        %1984 = vperm.xlu0 %1983, %v200
        %v1985 = vpop.permute.xlu0 %1984
        %1987 = vset.pattern.permute.xlu0 4
        %1988 = vperm.xlu0 %1987, %v201
        %v1989 = vpop.permute.xlu0 %1988
        %1991 = vset.pattern.permute.xlu0 4
        %1992 = vperm.xlu0 %1991, %v202
        %v1993 = vpop.permute.xlu0 %1992
        %1995 = vset.pattern.permute.xlu0 4
        %1996 = vperm.xlu0 %1995, %v203
        %v1997 = vpop.permute.xlu0 %1996
        %v1999 = vadd.f32 %v1903, %v1969
        %v2000 = vadd.f32 %v1904, %v1973
        %v2001 = vadd.f32 %v1905, %v1977
        %v2002 = vadd.f32 %v1906, %v1981
        %v2003 = vadd.f32 %v1907, %v1985
        %v2004 = vadd.f32 %v1908, %v1989
        %v2005 = vadd.f32 %v1909, %v1993
        %v2006 = vadd.f32 %v1910, %v1997
        %v2007 = vadd.f32 %v1911, %v1969
        %v2008 = vadd.f32 %v1912, %v1973
        %v2009 = vadd.f32 %v1913, %v1977
        %v2010 = vadd.f32 %v1914, %v1981
        %v2011 = vadd.f32 %v1915, %v1985
        %v2012 = vadd.f32 %v1916, %v1989
        %v2013 = vadd.f32 %v1917, %v1993
        %v2014 = vadd.f32 %v1918, %v1997
        %v2015 = vadd.f32 %v1919, %v1969
        %v2016 = vadd.f32 %v1920, %v1973
        %v2017 = vadd.f32 %v1921, %v1977
        %v2018 = vadd.f32 %v1922, %v1981
        %v2019 = vadd.f32 %v1923, %v1985
        %v2020 = vadd.f32 %v1924, %v1989
        %v2021 = vadd.f32 %v1925, %v1993
        %v2022 = vadd.f32 %v1926, %v1997
        %v2023 = vadd.f32 %v1927, %v1969
        %v2024 = vadd.f32 %v1928, %v1973
        %v2025 = vadd.f32 %v1929, %v1977
        %v2026 = vadd.f32 %v1930, %v1981
        %v2027 = vadd.f32 %v1931, %v1985
        %v2028 = vadd.f32 %v1932, %v1989
        %v2029 = vadd.f32 %v1933, %v1993
        %v2030 = vadd.f32 %v1934, %v1997
        %v2031 = vadd.f32 %v1935, %v1969
        %v2032 = vadd.f32 %v1936, %v1973
        %v2033 = vadd.f32 %v1937, %v1977
        %v2034 = vadd.f32 %v1938, %v1981
        %v2035 = vadd.f32 %v1939, %v1985
        %v2036 = vadd.f32 %v1940, %v1989
        %v2037 = vadd.f32 %v1941, %v1993
        %v2038 = vadd.f32 %v1942, %v1997
        %v2039 = vadd.f32 %v1943, %v1969
        %v2040 = vadd.f32 %v1944, %v1973
        %v2041 = vadd.f32 %v1945, %v1977
        %v2042 = vadd.f32 %v1946, %v1981
        %v2043 = vadd.f32 %v1947, %v1985
        %v2044 = vadd.f32 %v1948, %v1989
        %v2045 = vadd.f32 %v1949, %v1993
        %v2046 = vadd.f32 %v1950, %v1997
        %v2047 = vadd.f32 %v1951, %v1969
        %v2048 = vadd.f32 %v1952, %v1973
        %v2049 = vadd.f32 %v1953, %v1977
        %v2050 = vadd.f32 %v1954, %v1981
        %v2051 = vadd.f32 %v1955, %v1985
        %v2052 = vadd.f32 %v1956, %v1989
        %v2053 = vadd.f32 %v1957, %v1993
        %v2054 = vadd.f32 %v1958, %v1997
        %v2055 = vadd.f32 %v1959, %v1969
        %v2056 = vadd.f32 %v1960, %v1973
        %v2057 = vadd.f32 %v1961, %v1977
        %v2058 = vadd.f32 %v1962, %v1981
        %v2059 = vadd.f32 %v1963, %v1985
        %v2060 = vadd.f32 %v1964, %v1989
        %v2061 = vadd.f32 %v1965, %v1993
        %v2062 = vadd.f32 %v1966, %v1997
        %v2063 = vmax.f32 %v1999, 0.0
        %v2064 = vmax.f32 %v2000, 0.0
        %v2065 = vmax.f32 %v2001, 0.0
        %v2066 = vmax.f32 %v2002, 0.0
        %v2067 = vmax.f32 %v2003, 0.0
        %v2068 = vmax.f32 %v2004, 0.0
        %v2069 = vmax.f32 %v2005, 0.0
        %v2070 = vmax.f32 %v2006, 0.0
        %v2071 = vmax.f32 %v2007, 0.0
        %v2072 = vmax.f32 %v2008, 0.0
        %v2073 = vmax.f32 %v2009, 0.0
        %v2074 = vmax.f32 %v2010, 0.0
        %v2075 = vmax.f32 %v2011, 0.0
        %v2076 = vmax.f32 %v2012, 0.0
        %v2077 = vmax.f32 %v2013, 0.0
        %v2078 = vmax.f32 %v2014, 0.0
        %v2079 = vmax.f32 %v2015, 0.0
        %v2080 = vmax.f32 %v2016, 0.0
        %v2081 = vmax.f32 %v2017, 0.0
        %v2082 = vmax.f32 %v2018, 0.0
        %v2083 = vmax.f32 %v2019, 0.0
        %v2084 = vmax.f32 %v2020, 0.0
        %v2085 = vmax.f32 %v2021, 0.0
        %v2086 = vmax.f32 %v2022, 0.0
        %v2087 = vmax.f32 %v2023, 0.0
        %v2088 = vmax.f32 %v2024, 0.0
        %v2089 = vmax.f32 %v2025, 0.0
        %v2090 = vmax.f32 %v2026, 0.0
        %v2091 = vmax.f32 %v2027, 0.0
        %v2092 = vmax.f32 %v2028, 0.0
        %v2093 = vmax.f32 %v2029, 0.0
        %v2094 = vmax.f32 %v2030, 0.0
        %v2095 = vmax.f32 %v2031, 0.0
        %v2096 = vmax.f32 %v2032, 0.0
        %v2097 = vmax.f32 %v2033, 0.0
        %v2098 = vmax.f32 %v2034, 0.0
        %v2099 = vmax.f32 %v2035, 0.0
        %v2100 = vmax.f32 %v2036, 0.0
        %v2101 = vmax.f32 %v2037, 0.0
        %v2102 = vmax.f32 %v2038, 0.0
        %v2103 = vmax.f32 %v2039, 0.0
        %v2104 = vmax.f32 %v2040, 0.0
        %v2105 = vmax.f32 %v2041, 0.0
        %v2106 = vmax.f32 %v2042, 0.0
        %v2107 = vmax.f32 %v2043, 0.0
        %v2108 = vmax.f32 %v2044, 0.0
        %v2109 = vmax.f32 %v2045, 0.0
        %v2110 = vmax.f32 %v2046, 0.0
        %v2111 = vmax.f32 %v2047, 0.0
        %v2112 = vmax.f32 %v2048, 0.0
        %v2113 = vmax.f32 %v2049, 0.0
        %v2114 = vmax.f32 %v2050, 0.0
        %v2115 = vmax.f32 %v2051, 0.0
        %v2116 = vmax.f32 %v2052, 0.0
        %v2117 = vmax.f32 %v2053, 0.0
        %v2118 = vmax.f32 %v2054, 0.0
        %v2119 = vmax.f32 %v2055, 0.0
        %v2120 = vmax.f32 %v2056, 0.0
        %v2121 = vmax.f32 %v2057, 0.0
        %v2122 = vmax.f32 %v2058, 0.0
        %v2123 = vmax.f32 %v2059, 0.0
        %v2124 = vmax.f32 %v2060, 0.0
        %v2125 = vmax.f32 %v2061, 0.0
        %v2126 = vmax.f32 %v2062, 0.0
        %2127 = vmax.xlane.f32.xlu0 %v2063
        %v2128 = vpop.xlane.xlu0 %2127
        %2129 = vmax.xlane.f32.xlu0 %v2064
        %v2130 = vpop.xlane.xlu0 %2129
        %2131 = vmax.xlane.f32.xlu0 %v2065
        %v2132 = vpop.xlane.xlu0 %2131
        %2133 = vmax.xlane.f32.xlu0 %v2066
        %v2134 = vpop.xlane.xlu0 %2133
        %2135 = vmax.xlane.f32.xlu0 %v2067
        %v2136 = vpop.xlane.xlu0 %2135
        %2137 = vmax.xlane.f32.xlu0 %v2068
        %v2138 = vpop.xlane.xlu0 %2137
        %2139 = vmax.xlane.f32.xlu0 %v2069
        %v2140 = vpop.xlane.xlu0 %2139
        %2141 = vmax.xlane.f32.xlu0 %v2070
        %v2142 = vpop.xlane.xlu0 %2141
        %2143 = vmax.xlane.f32.xlu0 %v2071
        %v2144 = vpop.xlane.xlu0 %2143
        %2145 = vmax.xlane.f32.xlu0 %v2072
        %v2146 = vpop.xlane.xlu0 %2145
        %2147 = vmax.xlane.f32.xlu0 %v2073
        %v2148 = vpop.xlane.xlu0 %2147
        %2149 = vmax.xlane.f32.xlu0 %v2074
        %v2150 = vpop.xlane.xlu0 %2149
        %2151 = vmax.xlane.f32.xlu0 %v2075
        %v2152 = vpop.xlane.xlu0 %2151
        %2153 = vmax.xlane.f32.xlu0 %v2076
        %v2154 = vpop.xlane.xlu0 %2153
        %2155 = vmax.xlane.f32.xlu0 %v2077
        %v2156 = vpop.xlane.xlu0 %2155
        %2157 = vmax.xlane.f32.xlu0 %v2078
        %v2158 = vpop.xlane.xlu0 %2157
        %2159 = vmax.xlane.f32.xlu0 %v2079
        %v2160 = vpop.xlane.xlu0 %2159
        %2161 = vmax.xlane.f32.xlu0 %v2080
        %v2162 = vpop.xlane.xlu0 %2161
        %2163 = vmax.xlane.f32.xlu0 %v2081
        %v2164 = vpop.xlane.xlu0 %2163
        %2165 = vmax.xlane.f32.xlu0 %v2082
        %v2166 = vpop.xlane.xlu0 %2165
        %2167 = vmax.xlane.f32.xlu0 %v2083
        %v2168 = vpop.xlane.xlu0 %2167
        %2169 = vmax.xlane.f32.xlu0 %v2084
        %v2170 = vpop.xlane.xlu0 %2169
        %2171 = vmax.xlane.f32.xlu0 %v2085
        %v2172 = vpop.xlane.xlu0 %2171
        %2173 = vmax.xlane.f32.xlu0 %v2086
        %v2174 = vpop.xlane.xlu0 %2173
        %2175 = vmax.xlane.f32.xlu0 %v2087
        %v2176 = vpop.xlane.xlu0 %2175
        %2177 = vmax.xlane.f32.xlu0 %v2088
        %v2178 = vpop.xlane.xlu0 %2177
        %2179 = vmax.xlane.f32.xlu0 %v2089
        %v2180 = vpop.xlane.xlu0 %2179
        %2181 = vmax.xlane.f32.xlu0 %v2090
        %v2182 = vpop.xlane.xlu0 %2181
        %2183 = vmax.xlane.f32.xlu0 %v2091
        %v2184 = vpop.xlane.xlu0 %2183
        %2185 = vmax.xlane.f32.xlu0 %v2092
        %v2186 = vpop.xlane.xlu0 %2185
        %2187 = vmax.xlane.f32.xlu0 %v2093
        %v2188 = vpop.xlane.xlu0 %2187
        %2189 = vmax.xlane.f32.xlu0 %v2094
        %v2190 = vpop.xlane.xlu0 %2189
        %2191 = vmax.xlane.f32.xlu0 %v2095
        %v2192 = vpop.xlane.xlu0 %2191
        %2193 = vmax.xlane.f32.xlu0 %v2096
        %v2194 = vpop.xlane.xlu0 %2193
        %2195 = vmax.xlane.f32.xlu0 %v2097
        %v2196 = vpop.xlane.xlu0 %2195
        %2197 = vmax.xlane.f32.xlu0 %v2098
        %v2198 = vpop.xlane.xlu0 %2197
        %2199 = vmax.xlane.f32.xlu0 %v2099
        %v2200 = vpop.xlane.xlu0 %2199
        %2201 = vmax.xlane.f32.xlu0 %v2100
        %v2202 = vpop.xlane.xlu0 %2201
        %2203 = vmax.xlane.f32.xlu0 %v2101
        %v2204 = vpop.xlane.xlu0 %2203
        %2205 = vmax.xlane.f32.xlu0 %v2102
        %v2206 = vpop.xlane.xlu0 %2205
        %2207 = vmax.xlane.f32.xlu0 %v2103
        %v2208 = vpop.xlane.xlu0 %2207
        %2209 = vmax.xlane.f32.xlu0 %v2104
        %v2210 = vpop.xlane.xlu0 %2209
        %2211 = vmax.xlane.f32.xlu0 %v2105
        %v2212 = vpop.xlane.xlu0 %2211
        %2213 = vmax.xlane.f32.xlu0 %v2106
        %v2214 = vpop.xlane.xlu0 %2213
        %2215 = vmax.xlane.f32.xlu0 %v2107
        %v2216 = vpop.xlane.xlu0 %2215
        %2217 = vmax.xlane.f32.xlu0 %v2108
        %v2218 = vpop.xlane.xlu0 %2217
        %2219 = vmax.xlane.f32.xlu0 %v2109
        %v2220 = vpop.xlane.xlu0 %2219
        %2221 = vmax.xlane.f32.xlu0 %v2110
        %v2222 = vpop.xlane.xlu0 %2221
        %2223 = vmax.xlane.f32.xlu0 %v2111
        %v2224 = vpop.xlane.xlu0 %2223
        %2225 = vmax.xlane.f32.xlu0 %v2112
        %v2226 = vpop.xlane.xlu0 %2225
        %2227 = vmax.xlane.f32.xlu0 %v2113
        %v2228 = vpop.xlane.xlu0 %2227
        %2229 = vmax.xlane.f32.xlu0 %v2114
        %v2230 = vpop.xlane.xlu0 %2229
        %2231 = vmax.xlane.f32.xlu0 %v2115
        %v2232 = vpop.xlane.xlu0 %2231
        %2233 = vmax.xlane.f32.xlu0 %v2116
        %v2234 = vpop.xlane.xlu0 %2233
        %2235 = vmax.xlane.f32.xlu0 %v2117
        %v2236 = vpop.xlane.xlu0 %2235
        %2237 = vmax.xlane.f32.xlu0 %v2118
        %v2238 = vpop.xlane.xlu0 %2237
        %2239 = vmax.xlane.f32.xlu0 %v2119
        %v2240 = vpop.xlane.xlu0 %2239
        %2241 = vmax.xlane.f32.xlu0 %v2120
        %v2242 = vpop.xlane.xlu0 %2241
        %2243 = vmax.xlane.f32.xlu0 %v2121
        %v2244 = vpop.xlane.xlu0 %2243
        %2245 = vmax.xlane.f32.xlu0 %v2122
        %v2246 = vpop.xlane.xlu0 %2245
        %2247 = vmax.xlane.f32.xlu0 %v2123
        %v2248 = vpop.xlane.xlu0 %2247
        %2249 = vmax.xlane.f32.xlu0 %v2124
        %v2250 = vpop.xlane.xlu0 %2249
        %2251 = vmax.xlane.f32.xlu0 %v2125
        %v2252 = vpop.xlane.xlu0 %2251
        %2253 = vmax.xlane.f32.xlu0 %v2126
        %v2254 = vpop.xlane.xlu0 %2253
        %2255 = vmatpush.msra.mxu0 %v219
        %2256 = vmatpush.msra.mxu0 %v218
        %2257 = vmatpush.msra.mxu0 %v217
        %2258 = vmatpush.msra.mxu0 %v216
        %2259 = vmatpush.msra.mxu0 %v215
        %2260 = vmatpush.msra.mxu0 %v214
        %2261 = vmatpush.msra.mxu0 %v213
        %2262 = vmatpush.msra.mxu0 %v212
        %2263 = vmatpush.msra.mxu0 %v211
        %2264 = vmatpush.msra.mxu0 %v210
        %2265 = vmatpush.msra.mxu0 %v209
        %2266 = vmatpush.msra.mxu0 %v208
        %2267 = vmatpush.msra.mxu0 %v207
        %2268 = vmatpush.msra.mxu0 %v206
        %2269 = vmatpush.msra.mxu0 %v205
        %2270 = vmatpush.msra.mxu0 %v204
        %2271 = vmatmul.f32.gmra.mxu0 %v294
        %v2272 = vpop.f32.mrf.mxu0
        %v2273 = vadd.f32 0.0, %v2272
        %2274 = vdwg.mxu0
        %v2275 = vsel %vm830, %v2273, 0.0
        %v2276 = vrot.slane %v2275, 4
        %v2277 = vadd.f32 %v2275, %v2276
        %v2278 = vrot.slane %v2277, 2
        %v2279 = vadd.f32 %v2277, %v2278
        %v2280 = vrot.slane %v2279, 1
        %v2281 = vadd.f32 %v2279, %v2280
        %v2282 = vmul.f32 %v2273, %v2273
        %v2283 = vsel %vm830, %v2282, 0.0
        %v2284 = vrot.slane %v2283, 4
        %v2285 = vadd.f32 %v2283, %v2284
        %v2286 = vrot.slane %v2285, 2
        %v2287 = vadd.f32 %v2285, %v2286
        %v2288 = vrot.slane %v2287, 1
        %v2289 = vadd.f32 %v2287, %v2288
        %v2290 = vmul.f32 %v2281, 0.125
        %v2291 = vmul.f32 %v2289, 0.125
        %v2292 = vmul.f32 %v2290, %v2290
        %v2293 = vsub.f32 %v2291, %v2292
        %v2294 = vmax.f32 %v2293, 0.0
        %v2295 = vsub.f32 %v2273, %v2290
        %v2296 = vadd.f32 %v2294, 1e-05
        %v2297 = vrsqrt.pop %v2296
        %v2298 = vmul.f32 %v2297, %v2296
        %v2299 = vmul.f32 %v2298, %v2297
        %v2300 = vmul.f32 0.5, %v2299
        %v2301 = vsub.f32 1.5, %v2300
        %v2302 = vmul.f32 %v2297, %v2301
        %vm2303 = vweird.f32 %v2296
        %vm2304 = vweird.f32 %v2297
        %vm2305 = vmor %vm2303, %vm2304
        %v2306 = vsel %vm2305, %v2297, %v2302
        %v2307 = vmul.f32 %v2295, %v2306
        %v2308 = vperm.slane %v194, 2
        %v2309 = vmul.f32 %v2307, %v2308
        %v2310 = vperm.slane %v194, 3
        %v2311 = vadd.f32 %v2309, %v2310
        %v2312 = vmax.f32 %v2311, 0.0
        %v2314 = vsel %vm830, %v2312, 0
        %2316 = vmatpush.msra.mxu0 0.0
        %2317 = vmatpush.msra.mxu0 0.0
        %2318 = vmatpush.msra.mxu0 0.0
        %2319 = vmatpush.msra.mxu0 0.0
        %2320 = vmatpush.msra.mxu0 0.0
        %2321 = vmatpush.msra.mxu0 0.0
        %2322 = vmatpush.msra.mxu0 0.0
        %2323 = vmatpush.msra.mxu0 0.0
        %2324 = vmatpush.msra.mxu0 %v235
        %2325 = vmatpush.msra.mxu0 %v234
        %2326 = vmatpush.msra.mxu0 %v233
        %2327 = vmatpush.msra.mxu0 %v232
        %2328 = vmatpush.msra.mxu0 %v231
        %2329 = vmatpush.msra.mxu0 %v230
        %2330 = vmatpush.msra.mxu0 %v229
        %2331 = vmatpush.msra.mxu0 %v228
        %2332 = vmatmul.f32.gmra.mxu0 %v2314
        %v2333 = vpop.f32.mrf.mxu0
        %v2334 = vadd.f32 0.0, %v2333
        %2335 = vdwg.mxu0
        %v2336 = vsel %vm830, %v2334, 0.0
        %v2337 = vrot.slane %v2336, 4
        %v2338 = vadd.f32 %v2336, %v2337
        %v2339 = vrot.slane %v2338, 2
        %v2340 = vadd.f32 %v2338, %v2339
        %v2341 = vrot.slane %v2340, 1
        %v2342 = vadd.f32 %v2340, %v2341
        %v2343 = vmul.f32 %v2334, %v2334
        %v2344 = vsel %vm830, %v2343, 0.0
        %v2345 = vrot.slane %v2344, 4
        %v2346 = vadd.f32 %v2344, %v2345
        %v2347 = vrot.slane %v2346, 2
        %v2348 = vadd.f32 %v2346, %v2347
        %v2349 = vrot.slane %v2348, 1
        %v2350 = vadd.f32 %v2348, %v2349
        %v2351 = vmul.f32 %v2342, 0.125
        %v2352 = vmul.f32 %v2350, 0.125
        %v2353 = vmul.f32 %v2351, %v2351
        %v2354 = vsub.f32 %v2352, %v2353
        %v2355 = vmax.f32 %v2354, 0.0
        %v2356 = vsub.f32 %v2334, %v2351
        %v2357 = vadd.f32 %v2355, 1e-05
        %v2358 = vrsqrt.pop %v2357
        %v2359 = vmul.f32 %v2358, %v2357
        %v2360 = vmul.f32 %v2359, %v2358
        %v2361 = vmul.f32 0.5, %v2360
        %v2362 = vsub.f32 1.5, %v2361
        %v2363 = vmul.f32 %v2358, %v2362
        %vm2364 = vweird.f32 %v2357
        %vm2365 = vweird.f32 %v2358
        %vm2366 = vmor %vm2364, %vm2365
        %v2367 = vsel %vm2366, %v2358, %v2363
        %v2368 = vmul.f32 %v2356, %v2367
        %v2369 = vperm.slane %v194, 4
        %v2370 = vmul.f32 %v2368, %v2369
        %v2371 = vperm.slane %v194, 5
        %v2372 = vadd.f32 %v2370, %v2371
        %v2373 = vmax.f32 %v2372, 0.0
        %v2438 = vlaneseq
        %v2439 = vand.u32 %v2438, 127
        %v2440 = vperm.slane %v2128, %v2439
        %v2441 = vadd.s32 %v2439, 4294967288
        %v2442 = vperm.slane %v2130, %v2441
        %vm2443 = vcmask 130112
        %v2444 = vsel %vm2443, %v2442, %v2440
        %v2445 = vadd.s32 %v2439, 4294967280
        %v2446 = vperm.slane %v2132, %v2445
        %vm2447 = vcmask 195712
        %v2448 = vsel %vm2447, %v2446, %v2444
        %v2449 = vadd.s32 %v2439, 4294967272
        %v2450 = vperm.slane %v2134, %v2449
        %vm2451 = vcmask 261312
        %v2452 = vsel %vm2451, %v2450, %v2448
        %v2453 = vadd.s32 %v2439, 4294967264
        %v2454 = vperm.slane %v2136, %v2453
        %vm2455 = vcmask 326912
        %v2456 = vsel %vm2455, %v2454, %v2452
        %v2457 = vadd.s32 %v2439, 4294967256
        %v2458 = vperm.slane %v2138, %v2457
        %vm2459 = vcmask 392512
        %v2460 = vsel %vm2459, %v2458, %v2456
        %v2461 = vadd.s32 %v2439, 4294967248
        %v2462 = vperm.slane %v2140, %v2461
        %vm2463 = vcmask 458112
        %v2464 = vsel %vm2463, %v2462, %v2460
        %v2465 = vadd.s32 %v2439, 4294967240
        %v2466 = vperm.slane %v2142, %v2465
        %vm2467 = vcmask 523712
        %v2468 = vsel %vm2467, %v2466, %v2464
        %v2469 = vperm.slane %v2144, %v2439
        %v2470 = vperm.slane %v2146, %v2441
        %v2471 = vsel %vm2443, %v2470, %v2469
        %v2472 = vperm.slane %v2148, %v2445
        %v2473 = vsel %vm2447, %v2472, %v2471
        %v2474 = vperm.slane %v2150, %v2449
        %v2475 = vsel %vm2451, %v2474, %v2473
        %v2476 = vperm.slane %v2152, %v2453
        %v2477 = vsel %vm2455, %v2476, %v2475
        %v2478 = vperm.slane %v2154, %v2457
        %v2479 = vsel %vm2459, %v2478, %v2477
        %v2480 = vperm.slane %v2156, %v2461
        %v2481 = vsel %vm2463, %v2480, %v2479
        %v2482 = vperm.slane %v2158, %v2465
        %v2483 = vsel %vm2467, %v2482, %v2481
        %v2484 = vperm.slane %v2160, %v2439
        %v2485 = vperm.slane %v2162, %v2441
        %v2486 = vsel %vm2443, %v2485, %v2484
        %v2487 = vperm.slane %v2164, %v2445
        %v2488 = vsel %vm2447, %v2487, %v2486
        %v2489 = vperm.slane %v2166, %v2449
        %v2490 = vsel %vm2451, %v2489, %v2488
        %v2491 = vperm.slane %v2168, %v2453
        %v2492 = vsel %vm2455, %v2491, %v2490
        %v2493 = vperm.slane %v2170, %v2457
        %v2494 = vsel %vm2459, %v2493, %v2492
        %v2495 = vperm.slane %v2172, %v2461
        %v2496 = vsel %vm2463, %v2495, %v2494
        %v2497 = vperm.slane %v2174, %v2465
        %v2498 = vsel %vm2467, %v2497, %v2496
        %v2499 = vperm.slane %v2176, %v2439
        %v2500 = vperm.slane %v2178, %v2441
        %v2501 = vsel %vm2443, %v2500, %v2499
        %v2502 = vperm.slane %v2180, %v2445
        %v2503 = vsel %vm2447, %v2502, %v2501
        %v2504 = vperm.slane %v2182, %v2449
        %v2505 = vsel %vm2451, %v2504, %v2503
        %v2506 = vperm.slane %v2184, %v2453
        %v2507 = vsel %vm2455, %v2506, %v2505
        %v2508 = vperm.slane %v2186, %v2457
        %v2509 = vsel %vm2459, %v2508, %v2507
        %v2510 = vperm.slane %v2188, %v2461
        %v2511 = vsel %vm2463, %v2510, %v2509
        %v2512 = vperm.slane %v2190, %v2465
        %v2513 = vsel %vm2467, %v2512, %v2511
        %v2514 = vperm.slane %v2192, %v2439
        %v2515 = vperm.slane %v2194, %v2441
        %v2516 = vsel %vm2443, %v2515, %v2514
        %v2517 = vperm.slane %v2196, %v2445
        %v2518 = vsel %vm2447, %v2517, %v2516
        %v2519 = vperm.slane %v2198, %v2449
        %v2520 = vsel %vm2451, %v2519, %v2518
        %v2521 = vperm.slane %v2200, %v2453
        %v2522 = vsel %vm2455, %v2521, %v2520
        %v2523 = vperm.slane %v2202, %v2457
        %v2524 = vsel %vm2459, %v2523, %v2522
        %v2525 = vperm.slane %v2204, %v2461
        %v2526 = vsel %vm2463, %v2525, %v2524
        %v2527 = vperm.slane %v2206, %v2465
        %v2528 = vsel %vm2467, %v2527, %v2526
        %v2529 = vperm.slane %v2208, %v2439
        %v2530 = vperm.slane %v2210, %v2441
        %v2531 = vsel %vm2443, %v2530, %v2529
        %v2532 = vperm.slane %v2212, %v2445
        %v2533 = vsel %vm2447, %v2532, %v2531
        %v2534 = vperm.slane %v2214, %v2449
        %v2535 = vsel %vm2451, %v2534, %v2533
        %v2536 = vperm.slane %v2216, %v2453
        %v2537 = vsel %vm2455, %v2536, %v2535
        %v2538 = vperm.slane %v2218, %v2457
        %v2539 = vsel %vm2459, %v2538, %v2537
        %v2540 = vperm.slane %v2220, %v2461
        %v2541 = vsel %vm2463, %v2540, %v2539
        %v2542 = vperm.slane %v2222, %v2465
        %v2543 = vsel %vm2467, %v2542, %v2541
        %v2544 = vperm.slane %v2224, %v2439
        %v2545 = vperm.slane %v2226, %v2441
        %v2546 = vsel %vm2443, %v2545, %v2544
        %v2547 = vperm.slane %v2228, %v2445
        %v2548 = vsel %vm2447, %v2547, %v2546
        %v2549 = vperm.slane %v2230, %v2449
        %v2550 = vsel %vm2451, %v2549, %v2548
        %v2551 = vperm.slane %v2232, %v2453
        %v2552 = vsel %vm2455, %v2551, %v2550
        %v2553 = vperm.slane %v2234, %v2457
        %v2554 = vsel %vm2459, %v2553, %v2552
        %v2555 = vperm.slane %v2236, %v2461
        %v2556 = vsel %vm2463, %v2555, %v2554
        %v2557 = vperm.slane %v2238, %v2465
        %v2558 = vsel %vm2467, %v2557, %v2556
        %v2559 = vperm.slane %v2240, %v2439
        %v2560 = vperm.slane %v2242, %v2441
        %v2561 = vsel %vm2443, %v2560, %v2559
        %v2562 = vperm.slane %v2244, %v2445
        %v2563 = vsel %vm2447, %v2562, %v2561
        %v2564 = vperm.slane %v2246, %v2449
        %v2565 = vsel %vm2451, %v2564, %v2563
        %v2566 = vperm.slane %v2248, %v2453
        %v2567 = vsel %vm2455, %v2566, %v2565
        %v2568 = vperm.slane %v2250, %v2457
        %v2569 = vsel %vm2459, %v2568, %v2567
        %v2570 = vperm.slane %v2252, %v2461
        %v2571 = vsel %vm2463, %v2570, %v2569
        %v2572 = vperm.slane %v2254, %v2465
        %v2573 = vsel %vm2467, %v2572, %v2571
        %vm2574 = vcmask 1041409
        %v2575 = vsel %vm2574, %v2483, %v2468
        %vm2576 = vcmask 1042434
        %v2577 = vsel %vm2576, %v2498, %v2575
        %vm2578 = vcmask 1043459
        %v2579 = vsel %vm2578, %v2513, %v2577
        %vm2580 = vcmask 1044484
        %v2581 = vsel %vm2580, %v2528, %v2579
        %vm2582 = vcmask 1045509
        %v2583 = vsel %vm2582, %v2543, %v2581
        %vm2584 = vcmask 1046534
        %v2585 = vsel %vm2584, %v2558, %v2583
        %vm2586 = vcmask 1047559
        %v2587 = vsel %vm2586, %v2573, %v2585
        %v2588 = vsel %vm830, %v2587, 0
        %2590 = vmatpush.msra.mxu0 0.0
        %2591 = vmatpush.msra.mxu0 0.0
        %2592 = vmatpush.msra.mxu0 0.0
        %2593 = vmatpush.msra.mxu0 0.0
        %2594 = vmatpush.msra.mxu0 0.0
        %2595 = vmatpush.msra.mxu0 0.0
        %2596 = vmatpush.msra.mxu0 0.0
        %2597 = vmatpush.msra.mxu0 0.0
        %2598 = vmatpush.msra.mxu0 %v251
        %2599 = vmatpush.msra.mxu0 %v250
        %2600 = vmatpush.msra.mxu0 %v249
        %2601 = vmatpush.msra.mxu0 %v248
        %2602 = vmatpush.msra.mxu0 %v247
        %2603 = vmatpush.msra.mxu0 %v246
        %2604 = vmatpush.msra.mxu0 %v245
        %2605 = vmatpush.msra.mxu0 %v244
        %2606 = vmatmul.f32.gmra.mxu0 %v2588
        %v2607 = vpop.f32.mrf.mxu0
        %v2608 = vadd.f32 0.0, %v2607
        %2609 = vdwg.mxu0
        %v2611 = vsel %vm830, %v2373, 0
        %2613 = vmatpush.msra.mxu0 0.0
        %2614 = vmatpush.msra.mxu0 0.0
        %2615 = vmatpush.msra.mxu0 0.0
        %2616 = vmatpush.msra.mxu0 0.0
        %2617 = vmatpush.msra.mxu0 0.0
        %2618 = vmatpush.msra.mxu0 0.0
        %2619 = vmatpush.msra.mxu0 0.0
        %2620 = vmatpush.msra.mxu0 0.0
        %2621 = vmatpush.msra.mxu0 %v243
        %2622 = vmatpush.msra.mxu0 %v242
        %2623 = vmatpush.msra.mxu0 %v241
        %2624 = vmatpush.msra.mxu0 %v240
        %2625 = vmatpush.msra.mxu0 %v239
        %2626 = vmatpush.msra.mxu0 %v238
        %2627 = vmatpush.msra.mxu0 %v237
        %2628 = vmatpush.msra.mxu0 %v236
        %2629 = vmatmul.f32.gmra.mxu0 %v2611
        %v2630 = vpop.f32.mrf.mxu0
        %v2631 = vadd.f32 %v2608, %v2630
        %2632 = vdwg.mxu0
        %v2633 = vsel %vm830, %v2631, 0.0
        %v2634 = vrot.slane %v2633, 4
        %v2635 = vadd.f32 %v2633, %v2634
        %v2636 = vrot.slane %v2635, 2
        %v2637 = vadd.f32 %v2635, %v2636
        %v2638 = vrot.slane %v2637, 1
        %v2639 = vadd.f32 %v2637, %v2638
        %v2640 = vmul.f32 %v2631, %v2631
        %v2641 = vsel %vm830, %v2640, 0.0
        %v2642 = vrot.slane %v2641, 4
        %v2643 = vadd.f32 %v2641, %v2642
        %v2644 = vrot.slane %v2643, 2
        %v2645 = vadd.f32 %v2643, %v2644
        %v2646 = vrot.slane %v2645, 1
        %v2647 = vadd.f32 %v2645, %v2646
        %v2648 = vmul.f32 %v2639, 0.125
        %v2649 = vmul.f32 %v2647, 0.125
        %v2650 = vmul.f32 %v2648, %v2648
        %v2651 = vsub.f32 %v2649, %v2650
        %v2652 = vmax.f32 %v2651, 0.0
        %v2653 = vsub.f32 %v2631, %v2648
        %v2654 = vadd.f32 %v2652, 1e-05
        %v2655 = vrsqrt.pop %v2654
        %v2656 = vmul.f32 %v2655, %v2654
        %v2657 = vmul.f32 %v2656, %v2655
        %v2658 = vmul.f32 0.5, %v2657
        %v2659 = vsub.f32 1.5, %v2658
        %v2660 = vmul.f32 %v2655, %v2659
        %vm2661 = vweird.f32 %v2654
        %vm2662 = vweird.f32 %v2655
        %vm2663 = vmor %vm2661, %vm2662
        %v2664 = vsel %vm2663, %v2655, %v2660
        %v2665 = vmul.f32 %v2653, %v2664
        %v2666 = vperm.slane %v194, 6
        %v2667 = vmul.f32 %v2665, %v2666
        %v2668 = vperm.slane %v194, 7
        %v2669 = vadd.f32 %v2667, %v2668
        %v2670 = vmax.f32 %v2669, 0.0
        %v2671 = vperm.slane %v195, 0
        %v2673 = vsel %vm830, %v2670, 0
        %2675 = vmatpush.msra.mxu0 0.0
        %2676 = vmatpush.msra.mxu0 0.0
        %2677 = vmatpush.msra.mxu0 0.0
        %2678 = vmatpush.msra.mxu0 0.0
        %2679 = vmatpush.msra.mxu0 0.0
        %2680 = vmatpush.msra.mxu0 0.0
        %2681 = vmatpush.msra.mxu0 0.0
        %2682 = vmatpush.msra.mxu0 0.0
        %2683 = vmatpush.msra.mxu0 %v259
        %2684 = vmatpush.msra.mxu0 %v258
        %2685 = vmatpush.msra.mxu0 %v257
        %2686 = vmatpush.msra.mxu0 %v256
        %2687 = vmatpush.msra.mxu0 %v255
        %2688 = vmatpush.msra.mxu0 %v254
        %2689 = vmatpush.msra.mxu0 %v253
        %2690 = vmatpush.msra.mxu0 %v252
        %2691 = vmatmul.f32.gmra.mxu0 %v2673
        %v2692 = vpop.f32.mrf.mxu0
        %v2693 = vadd.f32 %v2671, %v2692
        %2694 = vdwg.mxu0
        %2695 = vst.msk [vmem:[%s188] sm:$0xff] %vm830, %v2693
        %s2696 = sand.u32 %s115, 1
        %s2697 = scalar_lea.sflag [#allocation3], %s2696
        %s2698 = sand.u32 %s115, 1
        %s2699 = smul.addr %s2698, 8
        %s2700 = scalar_lea.vmem [#allocation2], %s2699
        // Predicated region
        $region37: #{net_forward.1} parent=35 // pred_check
          %p2701 = pneg %p125
        $region38: #{net_forward.1} parent=35 // pred_check_branch
          %2703 = sbr.rel (%p2701) target = $region40
        $region39: #{net_forward.1} parent=35 // pred_region
          %2705 = vsyncadd %s2697, 0
          %s2706 = smul.addr %s18, 8
          %s2707 = scalar_lea.hbm %s4, %s2706
          %s2709 = sshll.u32 %s2700, 4
          %s2710 = int_to_ptr.vmem [resolvable:$true] %s2709
          %s2711 = sshll.u32 %s2707, 4
          %s2712 = int_to_ptr.hbm [resolvable:$true] %s2711
          %2714 = dma.vmem_to_hbm [thread:$0]  %s2710, 128, %s2712, %s2697
        $region40: #{net_forward.1} parent=35 // pred_fallthru
          _
      $region36: #{net_forward.1} parent=5 // pred_fallthru
        _
      %p2715 = scmp.le.s32.totalorder 2, %s13
      // Predicated region
      $region41: #{net_forward.1} parent=5 // pred_check
        %p2716 = pneg %p2715
      $region42: #{net_forward.1} parent=5 // pred_check_branch
        %2718 = sbr.rel (%p2716) target = $region44
      $region43: #{net_forward.1} parent=5 // pred_region
        %s2719 = ssub.s32 %s13, 2
        // Predicated region
        $region45: #{net_forward.1} parent=43 // pred_check
          %p2720 = pneg %p131
        $region46: #{net_forward.1} parent=43 // pred_check_branch
          %2722 = sbr.rel (%p2720) target = $region48
        $region47: #{net_forward.1} parent=43 // pred_region
          %s2723 = sand.u32 %s116, 1
          %s2724 = scalar_lea.sflag [#allocation3], %s2723
          %s2725 = sand.u32 %s116, 1
          %s2726 = smul.addr %s2725, 8
          %s2727 = scalar_lea.vmem [#allocation2], %s2726
          %2729 = dma.done %s2724, 128
        $region48: #{net_forward.1} parent=43 // pred_fallthru
          _
      $region44: #{net_forward.1} parent=5 // pred_fallthru
        _
    $region6: #{net_forward.1} parent=1 // loop_footer
      %s17 = sadd.s32 1, %s13
    $region7: #{net_forward.1} parent=1 // loop_footer_branch
      %12 = sbr.rel target = $region3
    $region8: #{net_forward.1} parent=1 // loop_exit
      _
    %2730 = vsyncpa [#allocation3], 1
    %s2731 = scalar_lea.sflag [#allocation3], 1
    %2732 = vsyncpa %s2731, 1

</llo_original>
